<compile_context>
chip_gen: v7x
topology: tpu7x:2x2x1
jax: 0.10.0
libtpu: 0.0.40
codegen_flags: <defaults>
</compile_context>

<pallas_src>
import functools

import jax
import jax.numpy as jnp
from jax.experimental import pallas as pl
from jax.experimental.pallas import tpu as pltpu

EPS = 1e-5   # AdaptiveInstanceNorm2d default eps
# TODO(synk): running_mean / running_var momentum updates of AdaptiveInstanceNorm2d are
# training-time buffer side effects that do not influence the forward output; omitted.


# ------------------------------------------------------------------ fused kernel
def _resblock_kernel(x_ref, w1_ref, w2_ref, gb_ref, o_ref,
                     xs_ref, h1s_ref, taps_ref, *, C, H, W, Wp, HpWp, margin):
    """One batch element per grid step.

    x_ref   : (C, HpWp) f32   flattened (H+2, W+2) spatial grid with a 1-px zero halo
    w*_ref  : (C, 9*C)  bf16  stacked-K conv weights, layout [cout, (ky*3+kx)*C + cin]
    gb_ref  : (C, 4)    f32   per-sample [gamma1, beta1, gamma2, beta2] columns
    o_ref   : (C, HpWp) f32
    xs_ref  : (C, margin + HpWp + margin) bf16 scratch (margin-padded input staging)
    h1s_ref : (C, margin + HpWp + margin) bf16 scratch (margin-padded mid activation)
    taps_ref: (9*C, HpWp) bf16 scratch (stacked-K tap matrix)
    """
    inv_hw = 1.0 / float(H * W)

    # Interior-column mask, built in-kernel (float floor-div, plain VPU ops; exact for
    # these small integer values).
    colf = jax.lax.broadcasted_iota(jnp.int32, (1, HpWp), 1).astype(jnp.float32)
    rowf = jnp.floor((colf + 0.5) * (1.0 / Wp))        # exact row index
    cinf = colf - rowf * Wp                            # exact col-within-row
    interior = ((rowf > 0.5) & (rowf < H + 0.5) &
                (cinf > 0.5) & (cinf < W + 0.5))       # (1, HpWp) bool
    fmask = interior.astype(jnp.float32)

    x = x_ref[...]                                     # (C, HpWp) f32, kept for residual
    xs_ref[:, margin:margin + HpWp] = x.astype(jnp.bfloat16)

    def conv3x3(src_ref, w_ref):
        # stride-1 / pad-1 3x3 conv as ONE stacked-K MXU dot.
        for k in range(9):
            dy, dx = k // 3, k % 3
            start = margin + (dy - 1) * Wp + (dx - 1)
            taps_ref[k * C:(k + 1) * C, :] = src_ref[:, start:start + HpWp]
        acc = jnp.dot(w_ref[...], taps_ref[...],
                      preferred_element_type=jnp.float32)      # (C, HpWp) f32
        # Halo output columns are the only ones that read (uninitialized) margin lanes;
        # use a select (not a multiply) so Inf/NaN garbage is discarded, not propagated.
        return jnp.where(interior, acc, 0.0)

    def adain(h, g, b):
        # per-(sample, channel) stats over the H*W valid positions, biased variance —
        # exactly what F.batch_norm(training=True) computes on the (1, B*C, H, W) view.
        mean = jnp.sum(h, axis=1, keepdims=True) * inv_hw      # (C, 1)
        d = (h - mean) * fmask
        var = jnp.sum(d * d, axis=1, keepdims=True) * inv_hw
        return d * jax.lax.rsqrt(var + EPS) * g + b

    g1, b1 = gb_ref[:, 0:1], gb_ref[:, 1:2]
    g2, b2 = gb_ref[:, 2:3], gb_ref[:, 3:4]

    # ---- conv1 -> AdaIN1 -> ReLU (halo columns forced to zero: they are conv2's padding)
    h1 = jnp.maximum(adain(conv3x3(xs_ref, w1_ref), g1, b1), 0.0) * fmask
    h1s_ref[:, margin:margin + HpWp] = h1.astype(jnp.bfloat16)

    # ---- conv2 -> AdaIN2 -> residual add (halo columns are cropped by the wrapper)
    h2 = adain(conv3x3(h1s_ref, w2_ref), g2, b2)
    o_ref[...] = x + h2


# ------------------------------------------------------------------ wrapper
def residual_block_adain(x, p):
    """x: (B, C, H, W) float32; p: prepared params (see prepare_params)."""
    B, C, H, W = x.shape
    Hp, Wp = H + 2, W + 2
    HpWp = Hp * Wp
    # margin >= Wp+1 keeps every tap slice in bounds; 128 keeps the interior scratch
    # stores lane-aligned.  Margins are never zero-filled or DMA'd (see kernel notes).
    margin = max(Wp + 1, 128)
    Ntot = HpWp + 2 * margin

    # One-time layout prep: NCHW -> 1-px zero halo, flattened spatial lanes.
    xflat = jnp.pad(x, ((0, 0), (0, 0), (1, 1), (1, 1))).reshape(B, C, HpWp)

    kernel = functools.partial(_resblock_kernel, C=C, H=H, W=W, Wp=Wp,
                               HpWp=HpWp, margin=margin)
    grid_spec = pltpu.PrefetchScalarGridSpec(
        num_scalar_prefetch=0,
        grid=(B,),                                   # one batch element per program
        in_specs=[
            pl.BlockSpec((None, C, HpWp), lambda b: (b, 0, 0)),   # x (flat, halo only)
            pl.BlockSpec((C, 9 * C), lambda b: (0, 0)),           # w1 stacked-K, bf16
            pl.BlockSpec((C, 9 * C), lambda b: (0, 0)),           # w2 stacked-K, bf16
            pl.BlockSpec((None, C, 4), lambda b: (b, 0, 0)),      # [g1, b1, g2, b2]
        ],
        out_specs=pl.BlockSpec((None, C, HpWp), lambda b: (b, 0, 0)),
        scratch_shapes=[
            pltpu.VMEM((C, Ntot), jnp.bfloat16),        # margin-padded x staging
            pltpu.VMEM((C, Ntot), jnp.bfloat16),        # margin-padded mid activation
            pltpu.VMEM((9 * C, HpWp), jnp.bfloat16),    # stacked-K tap matrix
        ],
    )
    out_flat = pl.pallas_call(
        kernel,
        out_shape=jax.ShapeDtypeStruct((B, C, HpWp), jnp.float32),
        grid_spec=grid_spec,
        compiler_params=pltpu.CompilerParams(
            dimension_semantics=("parallel",)),       # engages both TensorCores on v7x
    )(xflat, p["w1"], p["w2"], p["gb"])

    # Drop the halo columns -> NCHW.  (If blocks are chained, keep the padded flat
    # layout between layers and crop only once at the end of the chain.)
    return out_flat.reshape(B, C, Hp, Wp)[:, :, 1:-1, 1:-1]


# ------------------------------------------------------------------ params
def init_params(key, B, C):
    """Torch-layout parameters of ResidualBlockAdaIn (dim_in == dim_out == C)."""
    k = jax.random.split(key, 6)
    std = jnp.sqrt(2.0 / (C * 9))
    return {
        "w1": std * jax.random.normal(k[0], (C, C, 3, 3), jnp.float32),  # OIHW
        "w2": std * jax.random.normal(k[1], (C, C, 3, 3), jnp.float32),
        # AdaIN weight/bias are assigned externally in torch and have length B*C
        # (one scale/shift per (sample, channel) of the (1, B*C, H, W) batch_norm view).
        "g1": 1.0 + 0.2 * jax.random.normal(k[2], (B * C,), jnp.float32),
        "b1": 0.2 * jax.random.normal(k[3], (B * C,), jnp.float32),
        "g2": 1.0 + 0.2 * jax.random.normal(k[4], (B * C,), jnp.float32),
        "b2": 0.2 * jax.random.normal(k[5], (B * C,), jnp.float32),
    }


def prepare_params(p, B, C):
    """Init-time repack (done once, not per forward):
       OIHW -> stacked-K (Cout, 9*Cin) bf16 weights (index [cout, (ky*3+kx)*C + cin]);
       the four AdaIN vectors -> one (B, C, 4) f32 block."""
    def pack_w(w):   # (Cout, Cin, 3, 3) -> (Cout, ky, kx, Cin) -> (Cout, 9*Cin)
        return jnp.transpose(w, (0, 2, 3, 1)).reshape(C, 9 * C).astype(jnp.bfloat16)
    gb = jnp.stack([p["g1"].reshape(B, C), p["b1"].reshape(B, C),
                    p["g2"].reshape(B, C), p["b2"].reshape(B, C)],
                   axis=-1).astype(jnp.float32)                   # (B, C, 4)
    return {"w1": pack_w(p["w1"]), "w2": pack_w(p["w2"]), "gb": gb}


# ------------------------------------------------------------------ reference
def reference_forward(x, p):
    def conv(z, w):
        return jax.lax.conv_general_dilated(
            z, w, window_strides=(1, 1), padding=((1, 1), (1, 1)),
            dimension_numbers=("NCHW", "OIHW", "NCHW"),
            precision=jax.lax.Precision.HIGHEST)

    def adain(z, g, b):
        B, C = z.shape[0], z.shape[1]
        m = z.mean(axis=(2, 3), keepdims=True)
        v = jnp.square(z - m).mean(axis=(2, 3), keepdims=True)
        zn = (z - m) * jax.lax.rsqrt(v + EPS)
        return zn * g.reshape(B, C, 1, 1) + b.reshape(B, C, 1, 1)

    h = conv(x, p["w1"])
    h = jnp.maximum(adain(h, p["g1"], p["b1"]), 0.0)
    h = conv(h, p["w2"])
    h = adain(h, p["g2"], p["b2"])
    return x + h


if __name__ == "__main__":
    B, C, H, W = 2, 32, 16, 16          # dim_in == dim_out == 32 (residual requires it)
    key = jax.random.PRNGKey(0)
    pkey, xkey = jax.random.split(key)

    raw_params = init_params(pkey, B, C)
    prepared = prepare_params(raw_params, B, C)
    x = jax.random.normal(xkey, (B, C, H, W), jnp.float32)

    out = jax.block_until_ready(residual_block_adain(x, prepared))
    ref = jax.block_until_ready(reference_forward(x, raw_params))

    assert out.shape == (B, C, H, W), out.shape
    assert bool(jnp.all(jnp.isfinite(out)))
    err = float(jnp.max(jnp.abs(out - ref)))
    # bf16 MXU operands with f32 accumulation against an f32 HIGHEST-precision reference.
    assert err < 5e-2, f"max abs err = {err}"
    print("KERNEL_OK")
</pallas_src>

<mosaic_0001>
module attributes {stable_mosaic.version = 11 : i64} {
  func.func @_resblock_kernel(%arg0: i32, %arg1: memref<1x32x324xf32, #tpu.memory_space<vmem>>, %arg2: memref<32x288xbf16, #tpu.memory_space<vmem>>, %arg3: memref<32x288xbf16, #tpu.memory_space<vmem>>, %arg4: memref<1x32x4xf32, #tpu.memory_space<vmem>>, %arg5: memref<1x32x324xf32, #tpu.memory_space<vmem>>, %arg6: memref<32x580xbf16, #tpu.memory_space<vmem>>, %arg7: memref<32x580xbf16, #tpu.memory_space<vmem>>, %arg8: memref<288x324xbf16, #tpu.memory_space<vmem>>) attributes {dimension_semantics = [#tpu.dimension_semantics<parallel>], iteration_bounds = array<i64: 2>, scalar_prefetch = 0 : i64, scratch_operands = 3 : i64, tpu.core_type = #tpu.core_type<tc>, window_params = [{transform_indices = @transform_0, window_bounds = array<i64: 1, 32, 324>}, {pipeline_mode = #tpu.pipeline_mode<synchronous>, transform_indices = @transform_1, window_bounds = array<i64: 32, 288>}, {pipeline_mode = #tpu.pipeline_mode<synchronous>, transform_indices = @transform_2, window_bounds = array<i64: 32, 288>}, {transform_indices = @transform_3, window_bounds = array<i64: 1, 32, 4>}, {transform_indices = @transform_4, window_bounds = array<i64: 1, 32, 324>}]} {
    %0 = tpu.iota {dimensions = array<i32: 1>} : vector<1x324xi32>
    %1 = arith.sitofp %0 : vector<1x324xi32> to vector<1x324xf32>
    %cst = arith.constant 5.000000e-01 : f32
    %2 = vector.broadcast %cst : f32 to vector<1x324xf32>
    %3 = arith.addf %1, %2 : vector<1x324xf32>
    %cst_0 = arith.constant 0.055555556 : f32
    %4 = vector.broadcast %cst_0 : f32 to vector<1x324xf32>
    %5 = arith.mulf %3, %4 : vector<1x324xf32>
    %6 = math.floor %5 : vector<1x324xf32>
    %cst_1 = arith.constant 1.800000e+01 : f32
    %7 = vector.broadcast %cst_1 : f32 to vector<1x324xf32>
    %8 = arith.mulf %6, %7 : vector<1x324xf32>
    %9 = arith.subf %1, %8 : vector<1x324xf32>
    %cst_2 = arith.constant 5.000000e-01 : f32
    %10 = vector.broadcast %cst_2 : f32 to vector<1x324xf32>
    %11 = arith.cmpf ogt, %6, %10 : vector<1x324xf32>
    %cst_3 = arith.constant 1.650000e+01 : f32
    %12 = vector.broadcast %cst_3 : f32 to vector<1x324xf32>
    %13 = arith.cmpf olt, %6, %12 : vector<1x324xf32>
    %14 = arith.andi %11, %13 : vector<1x324xi1>
    %cst_4 = arith.constant 5.000000e-01 : f32
    %15 = vector.broadcast %cst_4 : f32 to vector<1x324xf32>
    %16 = arith.cmpf ogt, %9, %15 : vector<1x324xf32>
    %17 = arith.andi %14, %16 : vector<1x324xi1>
    %cst_5 = arith.constant 1.650000e+01 : f32
    %18 = vector.broadcast %cst_5 : f32 to vector<1x324xf32>
    %19 = arith.cmpf olt, %9, %18 : vector<1x324xf32>
    %20 = arith.andi %17, %19 : vector<1x324xi1>
    %21 = arith.extui %20 : vector<1x324xi1> to vector<1x324xi32>
    %22 = arith.sitofp %21 : vector<1x324xi32> to vector<1x324xf32>
    %c0 = arith.constant 0 : index
    %c0_6 = arith.constant 0 : index
    %c0_7 = arith.constant 0 : index
    %23 = vector.load %arg1[%c0, %c0_6, %c0_7] : memref<1x32x324xf32, #tpu.memory_space<vmem>>, vector<1x32x324xf32>
    %24 = vector.shape_cast %23 : vector<1x32x324xf32> to vector<32x324xf32>
    %25 = arith.truncf %24 : vector<32x324xf32> to vector<32x324xbf16>
    %c0_8 = arith.constant 0 : index
    %c128 = arith.constant 128 : index
    %26 = vector.load %arg6[%c0_8, %c128] : memref<32x580xbf16, #tpu.memory_space<vmem>>, vector<32x324xbf16>
    tpu.vector_store %arg6[%c0_8, %c128], %25 {strides = array<i32>} : memref<32x580xbf16, #tpu.memory_space<vmem>>, vector<32x324xbf16>,
    %c0_9 = arith.constant 0 : index
    %c0_10 = arith.constant 0 : index
    %c0_11 = arith.constant 0 : index
    %27 = vector.load %arg4[%c0_9, %c0_10, %c0_11] : memref<1x32x4xf32, #tpu.memory_space<vmem>>, vector<1x32x1xf32>
    %28 = vector.shape_cast %27 : vector<1x32x1xf32> to vector<32x1xf32>
    %c0_12 = arith.constant 0 : index
    %c0_13 = arith.constant 0 : index
    %c1 = arith.constant 1 : index
    %29 = vector.load %arg4[%c0_12, %c0_13, %c1] : memref<1x32x4xf32, #tpu.memory_space<vmem>>, vector<1x32x1xf32>
    %30 = vector.shape_cast %29 : vector<1x32x1xf32> to vector<32x1xf32>
    %c0_14 = arith.constant 0 : index
    %c0_15 = arith.constant 0 : index
    %c2 = arith.constant 2 : index
    %31 = vector.load %arg4[%c0_14, %c0_15, %c2] : memref<1x32x4xf32, #tpu.memory_space<vmem>>, vector<1x32x1xf32>
    %32 = vector.shape_cast %31 : vector<1x32x1xf32> to vector<32x1xf32>
    %c0_16 = arith.constant 0 : index
    %c0_17 = arith.constant 0 : index
    %c3 = arith.constant 3 : index
    %33 = vector.load %arg4[%c0_16, %c0_17, %c3] : memref<1x32x4xf32, #tpu.memory_space<vmem>>, vector<1x32x1xf32>
    %34 = vector.shape_cast %33 : vector<1x32x1xf32> to vector<32x1xf32>
    %c0_18 = arith.constant 0 : index
    %c109 = arith.constant 109 : index
    %35 = vector.load %arg6[%c0_18, %c109] : memref<32x580xbf16, #tpu.memory_space<vmem>>, vector<32x324xbf16>
    %c0_19 = arith.constant 0 : index
    %c0_20 = arith.constant 0 : index
    %36 = vector.load %arg8[%c0_19, %c0_20] : memref<288x324xbf16, #tpu.memory_space<vmem>>, vector<32x324xbf16>
    tpu.vector_store %arg8[%c0_19, %c0_20], %35 {strides = array<i32>} : memref<288x324xbf16, #tpu.memory_space<vmem>>, vector<32x324xbf16>,
    %c0_21 = arith.constant 0 : index
    %c110 = arith.constant 110 : index
    %37 = vector.load %arg6[%c0_21, %c110] : memref<32x580xbf16, #tpu.memory_space<vmem>>, vector<32x324xbf16>
    %c32 = arith.constant 32 : index
    %c0_22 = arith.constant 0 : index
    %38 = vector.load %arg8[%c32, %c0_22] : memref<288x324xbf16, #tpu.memory_space<vmem>>, vector<32x324xbf16>
    tpu.vector_store %arg8[%c32, %c0_22], %37 {strides = array<i32>} : memref<288x324xbf16, #tpu.memory_space<vmem>>, vector<32x324xbf16>,
    %c0_23 = arith.constant 0 : index
    %c111 = arith.constant 111 : index
    %39 = vector.load %arg6[%c0_23, %c111] : memref<32x580xbf16, #tpu.memory_space<vmem>>, vector<32x324xbf16>
    %c64 = arith.constant 64 : index
    %c0_24 = arith.constant 0 : index
    %40 = vector.load %arg8[%c64, %c0_24] : memref<288x324xbf16, #tpu.memory_space<vmem>>, vector<32x324xbf16>
    tpu.vector_store %arg8[%c64, %c0_24], %39 {strides = array<i32>} : memref<288x324xbf16, #tpu.memory_space<vmem>>, vector<32x324xbf16>,
    %c0_25 = arith.constant 0 : index
    %c127 = arith.constant 127 : index
    %41 = vector.load %arg6[%c0_25, %c127] : memref<32x580xbf16, #tpu.memory_space<vmem>>, vector<32x324xbf16>
    %c96 = arith.constant 96 : index
    %c0_26 = arith.constant 0 : index
    %42 = vector.load %arg8[%c96, %c0_26] : memref<288x324xbf16, #tpu.memory_space<vmem>>, vector<32x324xbf16>
    tpu.vector_store %arg8[%c96, %c0_26], %41 {strides = array<i32>} : memref<288x324xbf16, #tpu.memory_space<vmem>>, vector<32x324xbf16>,
    %c0_27 = arith.constant 0 : index
    %c128_28 = arith.constant 128 : index
    %43 = vector.load %arg6[%c0_27, %c128_28] : memref<32x580xbf16, #tpu.memory_space<vmem>>, vector<32x324xbf16>
    %c128_29 = arith.constant 128 : index
    %c0_30 = arith.constant 0 : index
    %44 = vector.load %arg8[%c128_29, %c0_30] : memref<288x324xbf16, #tpu.memory_space<vmem>>, vector<32x324xbf16>
    tpu.vector_store %arg8[%c128_29, %c0_30], %43 {strides = array<i32>} : memref<288x324xbf16, #tpu.memory_space<vmem>>, vector<32x324xbf16>,
    %c0_31 = arith.constant 0 : index
    %c129 = arith.constant 129 : index
    %45 = vector.load %arg6[%c0_31, %c129] : memref<32x580xbf16, #tpu.memory_space<vmem>>, vector<32x324xbf16>
    %c160 = arith.constant 160 : index
    %c0_32 = arith.constant 0 : index
    %46 = vector.load %arg8[%c160, %c0_32] : memref<288x324xbf16, #tpu.memory_space<vmem>>, vector<32x324xbf16>
    tpu.vector_store %arg8[%c160, %c0_32], %45 {strides = array<i32>} : memref<288x324xbf16, #tpu.memory_space<vmem>>, vector<32x324xbf16>,
    %c0_33 = arith.constant 0 : index
    %c145 = arith.constant 145 : index
    %47 = vector.load %arg6[%c0_33, %c145] : memref<32x580xbf16, #tpu.memory_space<vmem>>, vector<32x324xbf16>
    %c192 = arith.constant 192 : index
    %c0_34 = arith.constant 0 : index
    %48 = vector.load %arg8[%c192, %c0_34] : memref<288x324xbf16, #tpu.memory_space<vmem>>, vector<32x324xbf16>
    tpu.vector_store %arg8[%c192, %c0_34], %47 {strides = array<i32>} : memref<288x324xbf16, #tpu.memory_space<vmem>>, vector<32x324xbf16>,
    %c0_35 = arith.constant 0 : index
    %c146 = arith.constant 146 : index
    %49 = vector.load %arg6[%c0_35, %c146] : memref<32x580xbf16, #tpu.memory_space<vmem>>, vector<32x324xbf16>
    %c224 = arith.constant 224 : index
    %c0_36 = arith.constant 0 : index
    %50 = vector.load %arg8[%c224, %c0_36] : memref<288x324xbf16, #tpu.memory_space<vmem>>, vector<32x324xbf16>
    tpu.vector_store %arg8[%c224, %c0_36], %49 {strides = array<i32>} : memref<288x324xbf16, #tpu.memory_space<vmem>>, vector<32x324xbf16>,
    %c0_37 = arith.constant 0 : index
    %c147 = arith.constant 147 : index
    %51 = vector.load %arg6[%c0_37, %c147] : memref<32x580xbf16, #tpu.memory_space<vmem>>, vector<32x324xbf16>
    %c256 = arith.constant 256 : index
    %c0_38 = arith.constant 0 : index
    %52 = vector.load %arg8[%c256, %c0_38] : memref<288x324xbf16, #tpu.memory_space<vmem>>, vector<32x324xbf16>
    tpu.vector_store %arg8[%c256, %c0_38], %51 {strides = array<i32>} : memref<288x324xbf16, #tpu.memory_space<vmem>>, vector<32x324xbf16>,
    %c0_39 = arith.constant 0 : index
    %c0_40 = arith.constant 0 : index
    %53 = vector.load %arg2[%c0_39, %c0_40] : memref<32x288xbf16, #tpu.memory_space<vmem>>, vector<32x288xbf16>
    %c0_41 = arith.constant 0 : index
    %c0_42 = arith.constant 0 : index
    %54 = vector.load %arg8[%c0_41, %c0_42] : memref<288x324xbf16, #tpu.memory_space<vmem>>, vector<288x324xbf16>
    %cst_43 = arith.constant dense<0.000000e+00> : vector<32x324xf32>
    %55 = tpu.matmul %53, %54, %cst_43 {dimension_numbers = #tpu.dot_dimension_numbers<[1], [0], [0], [1], [0, 0, 1, 1], [], []>} : vector<32x288xbf16>, vector<288x324xbf16>, vector<32x324xf32> -> vector<32x324xf32>
    %cst_44 = arith.constant 0.000000e+00 : f32
    %56 = vector.shape_cast %20 : vector<1x324xi1> to vector<1x324xi1>
    %57 = vector.broadcast %56 : vector<1x324xi1> to vector<32x324xi1>
    %58 = vector.broadcast %cst_44 : f32 to vector<32x324xf32>
    %59 = arith.select %57, %55, %58 : vector<32x324xi1>, vector<32x324xf32>
    %cst_45 = arith.constant dense<0.000000e+00> : vector<32xf32>
    %60 = vector.multi_reduction <add>, %59, %cst_45 [1] : vector<32x324xf32> to vector<32xf32>
    %61 = vector.shape_cast %60 : vector<32xf32> to vector<32x1xf32>
    %cst_46 = arith.constant 3.906250e-03 : f32
    %62 = vector.broadcast %cst_46 : f32 to vector<32x1xf32>
    %63 = arith.mulf %61, %62 : vector<32x1xf32>
    %64 = vector.broadcast %63 : vector<32x1xf32> to vector<32x324xf32>
    %65 = arith.subf %59, %64 : vector<32x324xf32>
    %66 = vector.broadcast %22 : vector<1x324xf32> to vector<32x324xf32>
    %67 = arith.mulf %65, %66 : vector<32x324xf32>
    %68 = arith.mulf %67, %67 : vector<32x324xf32>
    %cst_47 = arith.constant dense<0.000000e+00> : vector<32xf32>
    %69 = vector.multi_reduction <add>, %68, %cst_47 [1] : vector<32x324xf32> to vector<32xf32>
    %70 = vector.shape_cast %69 : vector<32xf32> to vector<32x1xf32>
    %cst_48 = arith.constant 3.906250e-03 : f32
    %71 = vector.broadcast %cst_48 : f32 to vector<32x1xf32>
    %72 = arith.mulf %70, %71 : vector<32x1xf32>
    %cst_49 = arith.constant 9.99999974E-6 : f32
    %73 = vector.broadcast %cst_49 : f32 to vector<32x1xf32>
    %74 = arith.addf %72, %73 : vector<32x1xf32>
    %75 = math.rsqrt %74 : vector<32x1xf32>
    %76 = vector.broadcast %75 : vector<32x1xf32> to vector<32x324xf32>
    %77 = arith.mulf %67, %76 : vector<32x324xf32>
    %78 = vector.broadcast %28 : vector<32x1xf32> to vector<32x324xf32>
    %79 = arith.mulf %77, %78 : vector<32x324xf32>
    %80 = vector.broadcast %30 : vector<32x1xf32> to vector<32x324xf32>
    %81 = arith.addf %79, %80 : vector<32x324xf32>
    %cst_50 = arith.constant 0.000000e+00 : f32
    %82 = vector.broadcast %cst_50 : f32 to vector<32x324xf32>
    %83 = arith.maximumf %81, %82 : vector<32x324xf32>
    %84 = vector.broadcast %22 : vector<1x324xf32> to vector<32x324xf32>
    %85 = arith.mulf %83, %84 : vector<32x324xf32>
    %86 = arith.truncf %85 : vector<32x324xf32> to vector<32x324xbf16>
    %c0_51 = arith.constant 0 : index
    %c128_52 = arith.constant 128 : index
    %87 = vector.load %arg7[%c0_51, %c128_52] : memref<32x580xbf16, #tpu.memory_space<vmem>>, vector<32x324xbf16>
    tpu.vector_store %arg7[%c0_51, %c128_52], %86 {strides = array<i32>} : memref<32x580xbf16, #tpu.memory_space<vmem>>, vector<32x324xbf16>,
    %c0_53 = arith.constant 0 : index
    %c109_54 = arith.constant 109 : index
    %88 = vector.load %arg7[%c0_53, %c109_54] : memref<32x580xbf16, #tpu.memory_space<vmem>>, vector<32x324xbf16>
    %c0_55 = arith.constant 0 : index
    %c0_56 = arith.constant 0 : index
    %89 = vector.load %arg8[%c0_55, %c0_56] : memref<288x324xbf16, #tpu.memory_space<vmem>>, vector<32x324xbf16>
    tpu.vector_store %arg8[%c0_55, %c0_56], %88 {strides = array<i32>} : memref<288x324xbf16, #tpu.memory_space<vmem>>, vector<32x324xbf16>,
    %c0_57 = arith.constant 0 : index
    %c110_58 = arith.constant 110 : index
    %90 = vector.load %arg7[%c0_57, %c110_58] : memref<32x580xbf16, #tpu.memory_space<vmem>>, vector<32x324xbf16>
    %c32_59 = arith.constant 32 : index
    %c0_60 = arith.constant 0 : index
    %91 = vector.load %arg8[%c32_59, %c0_60] : memref<288x324xbf16, #tpu.memory_space<vmem>>, vector<32x324xbf16>
    tpu.vector_store %arg8[%c32_59, %c0_60], %90 {strides = array<i32>} : memref<288x324xbf16, #tpu.memory_space<vmem>>, vector<32x324xbf16>,
    %c0_61 = arith.constant 0 : index
    %c111_62 = arith.constant 111 : index
    %92 = vector.load %arg7[%c0_61, %c111_62] : memref<32x580xbf16, #tpu.memory_space<vmem>>, vector<32x324xbf16>
    %c64_63 = arith.constant 64 : index
    %c0_64 = arith.constant 0 : index
    %93 = vector.load %arg8[%c64_63, %c0_64] : memref<288x324xbf16, #tpu.memory_space<vmem>>, vector<32x324xbf16>
    tpu.vector_store %arg8[%c64_63, %c0_64], %92 {strides = array<i32>} : memref<288x324xbf16, #tpu.memory_space<vmem>>, vector<32x324xbf16>,
    %c0_65 = arith.constant 0 : index
    %c127_66 = arith.constant 127 : index
    %94 = vector.load %arg7[%c0_65, %c127_66] : memref<32x580xbf16, #tpu.memory_space<vmem>>, vector<32x324xbf16>
    %c96_67 = arith.constant 96 : index
    %c0_68 = arith.constant 0 : index
    %95 = vector.load %arg8[%c96_67, %c0_68] : memref<288x324xbf16, #tpu.memory_space<vmem>>, vector<32x324xbf16>
    tpu.vector_store %arg8[%c96_67, %c0_68], %94 {strides = array<i32>} : memref<288x324xbf16, #tpu.memory_space<vmem>>, vector<32x324xbf16>,
    %c0_69 = arith.constant 0 : index
    %c128_70 = arith.constant 128 : index
    %96 = vector.load %arg7[%c0_69, %c128_70] : memref<32x580xbf16, #tpu.memory_space<vmem>>, vector<32x324xbf16>
    %c128_71 = arith.constant 128 : index
    %c0_72 = arith.constant 0 : index
    %97 = vector.load %arg8[%c128_71, %c0_72] : memref<288x324xbf16, #tpu.memory_space<vmem>>, vector<32x324xbf16>
    tpu.vector_store %arg8[%c128_71, %c0_72], %96 {strides = array<i32>} : memref<288x324xbf16, #tpu.memory_space<vmem>>, vector<32x324xbf16>,
    %c0_73 = arith.constant 0 : index
    %c129_74 = arith.constant 129 : index
    %98 = vector.load %arg7[%c0_73, %c129_74] : memref<32x580xbf16, #tpu.memory_space<vmem>>, vector<32x324xbf16>
    %c160_75 = arith.constant 160 : index
    %c0_76 = arith.constant 0 : index
    %99 = vector.load %arg8[%c160_75, %c0_76] : memref<288x324xbf16, #tpu.memory_space<vmem>>, vector<32x324xbf16>
    tpu.vector_store %arg8[%c160_75, %c0_76], %98 {strides = array<i32>} : memref<288x324xbf16, #tpu.memory_space<vmem>>, vector<32x324xbf16>,
    %c0_77 = arith.constant 0 : index
    %c145_78 = arith.constant 145 : index
    %100 = vector.load %arg7[%c0_77, %c145_78] : memref<32x580xbf16, #tpu.memory_space<vmem>>, vector<32x324xbf16>
    %c192_79 = arith.constant 192 : index
    %c0_80 = arith.constant 0 : index
    %101 = vector.load %arg8[%c192_79, %c0_80] : memref<288x324xbf16, #tpu.memory_space<vmem>>, vector<32x324xbf16>
    tpu.vector_store %arg8[%c192_79, %c0_80], %100 {strides = array<i32>} : memref<288x324xbf16, #tpu.memory_space<vmem>>, vector<32x324xbf16>,
    %c0_81 = arith.constant 0 : index
    %c146_82 = arith.constant 146 : index
    %102 = vector.load %arg7[%c0_81, %c146_82] : memref<32x580xbf16, #tpu.memory_space<vmem>>, vector<32x324xbf16>
    %c224_83 = arith.constant 224 : index
    %c0_84 = arith.constant 0 : index
    %103 = vector.load %arg8[%c224_83, %c0_84] : memref<288x324xbf16, #tpu.memory_space<vmem>>, vector<32x324xbf16>
    tpu.vector_store %arg8[%c224_83, %c0_84], %102 {strides = array<i32>} : memref<288x324xbf16, #tpu.memory_space<vmem>>, vector<32x324xbf16>,
    %c0_85 = arith.constant 0 : index
    %c147_86 = arith.constant 147 : index
    %104 = vector.load %arg7[%c0_85, %c147_86] : memref<32x580xbf16, #tpu.memory_space<vmem>>, vector<32x324xbf16>
    %c256_87 = arith.constant 256 : index
    %c0_88 = arith.constant 0 : index
    %105 = vector.load %arg8[%c256_87, %c0_88] : memref<288x324xbf16, #tpu.memory_space<vmem>>, vector<32x324xbf16>
    tpu.vector_store %arg8[%c256_87, %c0_88], %104 {strides = array<i32>} : memref<288x324xbf16, #tpu.memory_space<vmem>>, vector<32x324xbf16>,
    %c0_89 = arith.constant 0 : index
    %c0_90 = arith.constant 0 : index
    %106 = vector.load %arg3[%c0_89, %c0_90] : memref<32x288xbf16, #tpu.memory_space<vmem>>, vector<32x288xbf16>
    %c0_91 = arith.constant 0 : index
    %c0_92 = arith.constant 0 : index
    %107 = vector.load %arg8[%c0_91, %c0_92] : memref<288x324xbf16, #tpu.memory_space<vmem>>, vector<288x324xbf16>
    %cst_93 = arith.constant dense<0.000000e+00> : vector<32x324xf32>
    %108 = tpu.matmul %106, %107, %cst_93 {dimension_numbers = #tpu.dot_dimension_numbers<[1], [0], [0], [1], [0, 0, 1, 1], [], []>} : vector<32x288xbf16>, vector<288x324xbf16>, vector<32x324xf32> -> vector<32x324xf32>
    %cst_94 = arith.constant 0.000000e+00 : f32
    %109 = vector.shape_cast %20 : vector<1x324xi1> to vector<1x324xi1>
    %110 = vector.broadcast %109 : vector<1x324xi1> to vector<32x324xi1>
    %111 = vector.broadcast %cst_94 : f32 to vector<32x324xf32>
    %112 = arith.select %110, %108, %111 : vector<32x324xi1>, vector<32x324xf32>
    %cst_95 = arith.constant dense<0.000000e+00> : vector<32xf32>
    %113 = vector.multi_reduction <add>, %112, %cst_95 [1] : vector<32x324xf32> to vector<32xf32>
    %114 = vector.shape_cast %113 : vector<32xf32> to vector<32x1xf32>
    %cst_96 = arith.constant 3.906250e-03 : f32
    %115 = vector.broadcast %cst_96 : f32 to vector<32x1xf32>
    %116 = arith.mulf %114, %115 : vector<32x1xf32>
    %117 = vector.broadcast %116 : vector<32x1xf32> to vector<32x324xf32>
    %118 = arith.subf %112, %117 : vector<32x324xf32>
    %119 = vector.broadcast %22 : vector<1x324xf32> to vector<32x324xf32>
    %120 = arith.mulf %118, %119 : vector<32x324xf32>
    %121 = arith.mulf %120, %120 : vector<32x324xf32>
    %cst_97 = arith.constant dense<0.000000e+00> : vector<32xf32>
    %122 = vector.multi_reduction <add>, %121, %cst_97 [1] : vector<32x324xf32> to vector<32xf32>
    %123 = vector.shape_cast %122 : vector<32xf32> to vector<32x1xf32>
    %cst_98 = arith.constant 3.906250e-03 : f32
    %124 = vector.broadcast %cst_98 : f32 to vector<32x1xf32>
    %125 = arith.mulf %123, %124 : vector<32x1xf32>
    %cst_99 = arith.constant 9.99999974E-6 : f32
    %126 = vector.broadcast %cst_99 : f32 to vector<32x1xf32>
    %127 = arith.addf %125, %126 : vector<32x1xf32>
    %128 = math.rsqrt %127 : vector<32x1xf32>
    %129 = vector.broadcast %128 : vector<32x1xf32> to vector<32x324xf32>
    %130 = arith.mulf %120, %129 : vector<32x324xf32>
    %131 = vector.broadcast %32 : vector<32x1xf32> to vector<32x324xf32>
    %132 = arith.mulf %130, %131 : vector<32x324xf32>
    %133 = vector.broadcast %34 : vector<32x1xf32> to vector<32x324xf32>
    %134 = arith.addf %132, %133 : vector<32x324xf32>
    %135 = arith.addf %24, %134 : vector<32x324xf32>
    %c0_100 = arith.constant 0 : index
    %c0_101 = arith.constant 0 : index
    %c0_102 = arith.constant 0 : index
    %136 = vector.load %arg5[%c0_100, %c0_101, %c0_102] : memref<1x32x324xf32, #tpu.memory_space<vmem>>, vector<1x32x324xf32>
    %137 = vector.shape_cast %136 : vector<1x32x324xf32> to vector<32x324xf32>
    %138 = vector.shape_cast %135 : vector<32x324xf32> to vector<1x32x324xf32>
    tpu.vector_store %arg5[%c0_100, %c0_101, %c0_102], %138 {strides = array<i32>} : memref<1x32x324xf32, #tpu.memory_space<vmem>>, vector<1x32x324xf32>,
    return
  }
  func.func @transform_0(%arg0: i32) -> (i32, i32, i32) {
    %c0_i32 = arith.constant 0 : i32
    %c0_i32_0 = arith.constant 0 : i32
    %c0_i32_1 = arith.constant 0 : i32
    return %arg0, %c0_i32, %c0_i32_0 : i32, i32, i32
  }
  func.func @transform_1(%arg0: i32) -> (i32, i32) {
    %c0_i32 = arith.constant 0 : i32
    %c0_i32_0 = arith.constant 0 : i32
    %c0_i32_1 = arith.constant 0 : i32
    return %c0_i32, %c0_i32_0 : i32, i32
  }
  func.func @transform_2(%arg0: i32) -> (i32, i32) {
    %c0_i32 = arith.constant 0 : i32
    %c0_i32_0 = arith.constant 0 : i32
    %c0_i32_1 = arith.constant 0 : i32
    return %c0_i32, %c0_i32_0 : i32, i32
  }
  func.func @transform_3(%arg0: i32) -> (i32, i32, i32) {
    %c0_i32 = arith.constant 0 : i32
    %c0_i32_0 = arith.constant 0 : i32
    %c0_i32_1 = arith.constant 0 : i32
    return %arg0, %c0_i32, %c0_i32_0 : i32, i32, i32
  }
  func.func @transform_4(%arg0: i32) -> (i32, i32, i32) {
    %c0_i32 = arith.constant 0 : i32
    %c0_i32_0 = arith.constant 0 : i32
    %c0_i32_1 = arith.constant 0 : i32
    return %arg0, %c0_i32, %c0_i32_0 : i32, i32, i32
  }
}

</mosaic_0001>

<llo_original>
// kernel: tpu_custom_call.1
$region0: #{tpu_custom_call.1}
  #allocation0 [shape = 'u32[]', space=smem, size = 0x4, offset = 0x4, fixed_abs, tag = 'smem constant byte address 0x4 - core index']
  #allocation1 [shape = 'u32[144,128]{1,0:T(1,128)}', space=vmem, size = 0x12000, scoped, tag = 'internal scratch']
  #allocation2 [shape = 'bf16[32,580]{1,0:T(16,128)(2,1)}', space=vmem, size = 0xa000, scoped, tag = 'scratch operand']
  #allocation3 [shape = 'bf16[32,580]{1,0:T(16,128)(2,1)}', space=vmem, size = 0xa000, scoped, tag = 'scratch operand']
  #allocation4 [shape = 'bf16[288,324]{1,0:T(16,128)(2,1)}', space=vmem, size = 0x36000, scoped, tag = 'scratch operand']
  %s0 = inlined_call_operand.hbm [shape: f32[2,32,324], index: 0, kind: input, shape index: {}]
  %s1 = inlined_call_operand.vmem [shape: bf16[32,288], index: 1, kind: input, shape index: {}]
  %s2 = inlined_call_operand.hbm [shape: bf16[32,288], index: 2, kind: input, shape index: {}]
  %s3 = inlined_call_operand.vmem [shape: f32[2,32,4], index: 3, kind: input, shape index: {}]
  %s4 = inlined_call_operand.hbm [shape: f32[2,32,324], index: 4, kind: output, shape index: {}]
  %s5 = sld [smem:[#allocation0]]
  $region57: #{tpu_custom_call.1} parent=0
    _
  %s7 = ssub.s32 1, %s5
  %s8 = scalar_select 0, %s7, %s5
  $region1: #{tpu_custom_call.1} parent=0
    #allocation5 [shape = 'u8[98304]{0}', space=vmem, size = 0x18000, scoped, tag = 'input window, operand 0']
    #allocation6 [shape = 's32[2]{0}', space=sflag, size = 0x8, scoped, tag = 'scoped memory for tpu_custom_call.1']
    #allocation7 [shape = 's32[2]{0}', space=sflag, size = 0x8, scoped, tag = 'scoped memory for tpu_custom_call.1']
    #allocation8 [shape = 'u8[24576]{0}', space=vmem, size = 0x6000, scoped, tag = 'input window, operand 2, single buffered']
    #allocation9 [shape = 's32[1]{0}', space=sflag, size = 0x4, scoped, tag = 'scoped memory for tpu_custom_call.1']
    #allocation10 [shape = 'u8[98304]{0}', space=vmem, size = 0x18000, scoped, tag = 'output window, operand 0']
    %9 = vsyncpa [#allocation6], 0
    %s10 = scalar_lea.sflag [#allocation6], 1
    %11 = vsyncpa %s10, 0
    %12 = vsyncpa [#allocation9], 0
    %13 = vsyncpa [#allocation7], 0
    %s14 = scalar_lea.sflag [#allocation7], 1
    %15 = vsyncpa %s14, 0
    loop: start=0, step=1, limit=4
    $region2: #{tpu_custom_call.1} parent=1 // loop_pre_header
      _
    $region3: #{tpu_custom_call.1} parent=1 // loop_header
      %s17 = sphi 0, %s21
      %p18 = scmp.ge.s32.totalorder %s17, 4
      %s27 = sphi 0, %s29
      %s30 = sphi 0, %s27
      %s31 = sphi 0, %s30
      %s47 = sphi 0, %s31
      %s51 = sphi 0, %s51
      %s53 = sphi 0, %s51
      %s54 = sphi 0, %s53
      %s68 = sphi 0, %s54
      %s72 = sphi 0, %s72
      %s74 = sphi 0, %s72
      %s75 = sphi 0, %s74
      %s89 = sphi 0, %s75
      %s95 = sphi 0, %s97
      %s98 = sphi 0, %s95
      %s99 = sphi 0, %s98
      %s115 = sphi 0, %s99
      %s121 = sphi 0, %s123
      %s124 = sphi 0, %s121
      %s125 = sphi 0, %s124
      %s141 = sphi 0, %s125
    $region4: #{tpu_custom_call.1} parent=1 // loop_header_branch
      %20 = sbr.rel (%p18) target = $region8
    $region5: #{tpu_custom_call.1} parent=1 // loop_body
      %s22 = ssub.s32 %s17, 1
      %s23 = ssub.s32 %s17, 2
      %s24 = sadd.s32 %s17, 1
      %s25 = ssub.s32 %s17, %s24
      %p26 = scmp.eq.s32.totalorder %s25, 0
      %s28 = sadd.s32 %s27, 1
      %s29 = scalar_select %p26, %s27, %s28
      %p32 = pneg %p26
      %p33 = scmp.eq.s32.totalorder %s17, 1
      %p34 = por %p32, %p33
      %p35 = scmp.ne.s32.totalorder %s27, %s30
      %p36 = scmp.eq.s32.totalorder %s17, 0
      %p37 = por %p35, %p36
      %p38 = scmp.ne.s32.totalorder %s27, %s30
      %p39 = scmp.eq.s32.totalorder %s22, 1
      %p40 = por %p38, %p39
      %p41 = scmp.ne.s32.totalorder %s30, %s31
      %p42 = scmp.eq.s32.totalorder %s22, 0
      %p43 = por %p41, %p42
      %p44 = scmp.ne.s32.totalorder %s30, %s31
      %p45 = scmp.eq.s32.totalorder %s23, 1
      %p46 = por %p44, %p45
      %p48 = scmp.ne.s32.totalorder %s31, %s47
      %p49 = scmp.eq.s32.totalorder %s23, 0
      %p50 = por %p48, %p49
      %s52 = sadd.s32 %s51, 1
      %p55 = scmp.eq.s32.totalorder %s17, 1
      %p56 = scmp.ne.s32.totalorder %s51, %s53
      %p57 = scmp.eq.s32.totalorder %s17, 0
      %p58 = por %p56, %p57
      %p59 = scmp.ne.s32.totalorder %s51, %s53
      %p60 = scmp.eq.s32.totalorder %s22, 1
      %p61 = por %p59, %p60
      %p62 = scmp.ne.s32.totalorder %s53, %s54
      %p63 = scmp.eq.s32.totalorder %s22, 0
      %p64 = por %p62, %p63
      %p65 = scmp.ne.s32.totalorder %s53, %s54
      %p66 = scmp.eq.s32.totalorder %s23, 1
      %p67 = por %p65, %p66
      %p69 = scmp.ne.s32.totalorder %s54, %s68
      %p70 = scmp.eq.s32.totalorder %s23, 0
      %p71 = por %p69, %p70
      %s73 = sadd.s32 %s72, 1
      %p76 = scmp.eq.s32.totalorder %s17, 1
      %p77 = scmp.ne.s32.totalorder %s72, %s74
      %p78 = scmp.eq.s32.totalorder %s17, 0
      %p79 = por %p77, %p78
      %p80 = scmp.ne.s32.totalorder %s72, %s74
      %p81 = scmp.eq.s32.totalorder %s22, 1
      %p82 = por %p80, %p81
      %p83 = scmp.ne.s32.totalorder %s74, %s75
      %p84 = scmp.eq.s32.totalorder %s22, 0
      %p85 = por %p83, %p84
      %p86 = scmp.ne.s32.totalorder %s74, %s75
      %p87 = scmp.eq.s32.totalorder %s23, 1
      %p88 = por %p86, %p87
      %p90 = scmp.ne.s32.totalorder %s75, %s89
      %p91 = scmp.eq.s32.totalorder %s23, 0
      %p92 = por %p90, %p91
      %s93 = ssub.s32 %s17, %s24
      %p94 = scmp.eq.s32.totalorder %s93, 0
      %s96 = sadd.s32 %s95, 1
      %s97 = scalar_select %p94, %s95, %s96
      %p100 = pneg %p94
      %p101 = scmp.eq.s32.totalorder %s17, 1
      %p102 = por %p100, %p101
      %p103 = scmp.ne.s32.totalorder %s95, %s98
      %p104 = scmp.eq.s32.totalorder %s17, 0
      %p105 = por %p103, %p104
      %p106 = scmp.ne.s32.totalorder %s95, %s98
      %p107 = scmp.eq.s32.totalorder %s22, 1
      %p108 = por %p106, %p107
      %p109 = scmp.ne.s32.totalorder %s98, %s99
      %p110 = scmp.eq.s32.totalorder %s22, 0
      %p111 = por %p109, %p110
      %p112 = scmp.ne.s32.totalorder %s98, %s99
      %p113 = scmp.eq.s32.totalorder %s23, 1
      %p114 = por %p112, %p113
      %p116 = scmp.ne.s32.totalorder %s99, %s115
      %p117 = scmp.eq.s32.totalorder %s23, 0
      %p118 = por %p116, %p117
      %s119 = ssub.s32 %s17, %s24
      %p120 = scmp.eq.s32.totalorder %s119, 0
      %s122 = sadd.s32 %s121, 1
      %s123 = scalar_select %p120, %s121, %s122
      %p126 = pneg %p120
      %p127 = scmp.eq.s32.totalorder %s17, 1
      %p128 = por %p126, %p127
      %p129 = scmp.ne.s32.totalorder %s121, %s124
      %p130 = scmp.eq.s32.totalorder %s17, 0
      %p131 = por %p129, %p130
      %p132 = scmp.ne.s32.totalorder %s121, %s124
      %p133 = scmp.eq.s32.totalorder %s22, 1
      %p134 = por %p132, %p133
      %p135 = scmp.ne.s32.totalorder %s124, %s125
      %p136 = scmp.eq.s32.totalorder %s22, 0
      %p137 = por %p135, %p136
      %p138 = scmp.ne.s32.totalorder %s124, %s125
      %p139 = scmp.eq.s32.totalorder %s23, 1
      %p140 = por %p138, %p139
      %p142 = scmp.ne.s32.totalorder %s125, %s141
      %p143 = scmp.eq.s32.totalorder %s23, 0
      %p144 = por %p142, %p143
      %p145 = scmp.le.s32.totalorder 1, %s17
      %p146 = scmp.lt.s32.totalorder %s17, 3
      %p147 = pnand %p145, %p146
      %p148 = pneg %p147
      // Predicated region
      $region9: #{tpu_custom_call.1} parent=5 // pred_check
        _
      $region10: #{tpu_custom_call.1} parent=5 // pred_check_branch
        %150 = sbr.rel (%p147) target = $region12
      $region11: #{tpu_custom_call.1} parent=5 // pred_region
        %s151 = ssub.s32 %s17, 1
        // Predicated region
        $region13: #{tpu_custom_call.1} parent=11 // pred_check
          %p152 = pneg %p64
        $region14: #{tpu_custom_call.1} parent=11 // pred_check_branch
          %154 = sbr.rel (%p152) target = $region16
        $region15: #{tpu_custom_call.1} parent=11 // pred_region
          _
        $region16: #{tpu_custom_call.1} parent=11 // pred_fallthru
          _
        // Predicated region
        $region17: #{tpu_custom_call.1} parent=11 // pred_check
          %p155 = pneg %p85
        $region18: #{tpu_custom_call.1} parent=11 // pred_check_branch
          %157 = sbr.rel (%p155) target = $region20
        $region19: #{tpu_custom_call.1} parent=11 // pred_region
          %s159 = ssub.s32 768, 768
          %160 = vsyncadd [#allocation9], %s159
          %s161 = sshll.u32 [#allocation8], 4
          %s162 = int_to_ptr.vmem [resolvable:$true] %s161
          %167 = dma.hbm_to_vmem [thread:$0]  %s2, 768, %s162, [#allocation9], 192, 192, 12
        $region20: #{tpu_custom_call.1} parent=11 // pred_fallthru
          _
      $region12: #{tpu_custom_call.1} parent=5 // pred_fallthru
        _
      %p168 = scmp.lt.s32.totalorder %s17, 2
      // Predicated region
      $region21: #{tpu_custom_call.1} parent=5 // pred_check
        %p169 = pneg %p168
      $region22: #{tpu_custom_call.1} parent=5 // pred_check_branch
        %171 = sbr.rel (%p169) target = $region24
      $region23: #{tpu_custom_call.1} parent=5 // pred_region
        // Predicated region
        $region25: #{tpu_custom_call.1} parent=23 // pred_check
          %p172 = pneg %p37
        $region26: #{tpu_custom_call.1} parent=23 // pred_check_branch
          %174 = sbr.rel (%p172) target = $region28
        $region27: #{tpu_custom_call.1} parent=23 // pred_region
          %s175 = sand.u32 %s27, 1
          %s176 = scalar_lea.sflag [#allocation6], %s175
          %s177 = sand.u32 %s27, 1
          %s178 = smul.addr %s177, 96
          %s179 = scalar_lea.vmem [#allocation5], %s178
          %s181 = ssub.s32 1536, 1536
          %182 = vsyncadd %s176, %s181
          %s183 = smul.addr %s17, 12
          %s184 = smul.addr %s183, 128
          %s185 = scalar_lea.hbm %s0, %s184
          %s186 = sshll.u32 %s179, 4
          %s187 = int_to_ptr.vmem [resolvable:$true] %s186
          %192 = dma.hbm_to_vmem [thread:$0]  %s185, 1536, %s187, %s176, 384, 384, 24
        $region28: #{tpu_custom_call.1} parent=23 // pred_fallthru
          _
        // Predicated region
        $region29: #{tpu_custom_call.1} parent=23 // pred_check
          %p193 = pneg %p105
        $region30: #{tpu_custom_call.1} parent=23 // pred_check_branch
          %195 = sbr.rel (%p193) target = $region32
        $region31: #{tpu_custom_call.1} parent=23 // pred_region
          %p196 = scmp.lt.s32.totalorder %s17, 1
          %s197 = scalar_select %p196, %s17, 1
          %s198 = smul.addr %s197, 4
          %s199 = smul.addr %s198, 8
          %s200 = scalar_lea.vmem %s3, %s199
        $region32: #{tpu_custom_call.1} parent=23 // pred_fallthru
          _
      $region24: #{tpu_custom_call.1} parent=5 // pred_fallthru
        _
      %p201 = scmp.le.s32.totalorder 1, %s17
      %p202 = scmp.lt.s32.totalorder %s17, 3
      %p203 = pnand %p201, %p202
      %p204 = pneg %p203
      // Predicated region
      $region33: #{tpu_custom_call.1} parent=5 // pred_check
        _
      $region34: #{tpu_custom_call.1} parent=5 // pred_check_branch
        %206 = sbr.rel (%p203) target = $region36
      $region35: #{tpu_custom_call.1} parent=5 // pred_region
        %s207 = ssub.s32 %s17, 1
        %s208 = sand.u32 %s30, 1
        %s209 = scalar_lea.sflag [#allocation6], %s208
        %s210 = sand.u32 %s30, 1
        %s211 = smul.addr %s210, 96
        %s212 = scalar_lea.vmem [#allocation5], %s211
        // Predicated region
        $region37: #{tpu_custom_call.1} parent=35 // pred_check
          %p213 = pneg %p43
        $region38: #{tpu_custom_call.1} parent=35 // pred_check_branch
          %215 = sbr.rel (%p213) target = $region40
        $region39: #{tpu_custom_call.1} parent=35 // pred_region
          %216 = dma.done %s209, 1536
        $region40: #{tpu_custom_call.1} parent=35 // pred_fallthru
          _
        // Predicated region
        $region41: #{tpu_custom_call.1} parent=35 // pred_check
          %p217 = pneg %p85
        $region42: #{tpu_custom_call.1} parent=35 // pred_check_branch
          %219 = sbr.rel (%p217) target = $region44
        $region43: #{tpu_custom_call.1} parent=35 // pred_region
          %220 = dma.done [#allocation9], 768
        $region44: #{tpu_custom_call.1} parent=35 // pred_fallthru
          _
        %s221 = sand.u32 %s30, 1
        %s222 = scalar_lea.sflag [#allocation6], %s221
        %s223 = sand.u32 %s30, 1
        %s224 = smul.addr %s223, 96
        %s225 = scalar_lea.vmem [#allocation5], %s224
        %p226 = pneg %p43
        %p227 = pneg %p40
        %p228 = pneg %p64
        %p229 = pneg %p61
        %p230 = pneg %p85
        %p231 = pneg %p82
        %p232 = scmp.lt.s32.totalorder %s22, 1
        %s233 = scalar_select %p232, %s22, 1
        %s234 = smul.addr %s233, 4
        %s235 = smul.addr %s234, 8
        %s236 = scalar_lea.vmem %s3, %s235
        %p237 = pneg %p111
        %p238 = pneg %p108
        %p239 = pneg %p137
        %p240 = pneg %p134
        %s241 = sand.u32 %s124, 1
        %s242 = scalar_lea.sflag [#allocation7], %s241
        %s243 = sand.u32 %s124, 1
        %s244 = smul.addr %s243, 96
        %s245 = scalar_lea.vmem [#allocation10], %s244
        %p246 = scmp.lt.s32.totalorder %s22, 1
        %s247 = scalar_select %p246, %s22, 1
        %s248 = smul.addr %s247, 4
        %s249 = smul.addr %s248, 8
        %s250 = scalar_lea.vmem %s3, %s249
        %v252 = vlaneseq
        %v253 = vand.u32 %v252, 127
        %v254 = vadd.s32 %v253, 128
        %v255 = vadd.s32 %v253, 256
        %v256 = vcvt.s32.f32 %v253
        %v257 = vcvt.s32.f32 %v254
        %v258 = vcvt.s32.f32 %v255
        %v259 = vadd.f32 %v256, 0.5
        %v260 = vadd.f32 %v257, 0.5
        %v261 = vadd.f32 %v258, 0.5
        %v262 = vmul.f32 %v259, 0.055555556
        %v263 = vmul.f32 %v260, 0.055555556
        %v264 = vmul.f32 %v261, 0.055555556
        %v265 = vfloor.f32 %v262
        %v266 = vfloor.f32 %v263
        %v267 = vfloor.f32 %v264
        %v268 = vmul.f32 %v265, 18.0
        %v269 = vmul.f32 %v266, 18.0
        %v270 = vmul.f32 %v267, 18.0
        %v271 = vsub.f32 %v256, %v268
        %v272 = vsub.f32 %v257, %v269
        %v273 = vsub.f32 %v258, %v270
        %vm274 = vcmp.gt.f32.partialorder %v265, 0.5
        %vm275 = vcmp.gt.f32.partialorder %v266, 0.5
        %vm276 = vcmp.gt.f32.partialorder %v267, 0.5
        %vm277 = vcmp.lt.f32.partialorder %v265, 16.5
        %vm278 = vcmp.lt.f32.partialorder %v266, 16.5
        %vm279 = vcmp.lt.f32.partialorder %v267, 16.5
        %vm280 = vmand %vm274, %vm277
        %vm281 = vmand %vm275, %vm278
        %vm282 = vmand %vm276, %vm279
        %vm283 = vcmp.gt.f32.partialorder %v271, 0.5
        %vm284 = vcmp.gt.f32.partialorder %v272, 0.5
        %vm285 = vcmp.gt.f32.partialorder %v273, 0.5
        %vm286 = vmand %vm280, %vm283
        %vm287 = vmand %vm281, %vm284
        %vm288 = vmand %vm282, %vm285
        %vm289 = vcmp.lt.f32.partialorder %v271, 16.5
        %vm290 = vcmp.lt.f32.partialorder %v272, 16.5
        %vm291 = vcmp.lt.f32.partialorder %v273, 16.5
        %vm292 = vmand %vm286, %vm289
        %vm293 = vmand %vm287, %vm290
        %vm294 = vmand %vm288, %vm291
        %v295 = vsel %vm292, 1, 0
        %v296 = vsel %vm293, 1, 0
        %v297 = vsel %vm294, 1, 0
        %v298 = vcvt.s32.f32 %v295
        %v299 = vcvt.s32.f32 %v296
        %v300 = vcvt.s32.f32 %v297
        %v301 = vld [vmem:[%s212] sm:$0xff]
        %v302 = vld [vmem:[%s212 + $0x8] sm:$0xff]
        %v303 = vld [vmem:[%s212 + $0x10] sm:$0xff]
        %v304 = vld [vmem:[%s212 + $0x18] sm:$0xff]
        %v305 = vld [vmem:[%s212 + $0x20] sm:$0xff]
        %v306 = vld [vmem:[%s212 + $0x28] sm:$0xff]
        %v307 = vld [vmem:[%s212 + $0x30] sm:$0xff]
        %v308 = vld [vmem:[%s212 + $0x38] sm:$0xff]
        %v309 = vld [vmem:[%s212 + $0x40] sm:$0xff]
        %v310 = vld [vmem:[%s212 + $0x48] sm:$0xff]
        %v311 = vld [vmem:[%s212 + $0x50] sm:$0xff]
        %v312 = vld [vmem:[%s212 + $0x58] sm:$0xff]
        %v313 = vpack.c.bf16 %v304, %v301
        %v314 = vpack.c.bf16 %v305, %v302
        %v315 = vpack.c.bf16 %v306, %v303
        %v316 = vpack.c.bf16 %v310, %v307
        %v317 = vpack.c.bf16 %v311, %v308
        %v318 = vpack.c.bf16 %v312, %v309
        %319 = vst [vmem:[#allocation2 + $0x8] sm:$0xff] %v313
        %320 = vst [vmem:[#allocation2 + $0x10] sm:$0xff] %v314
        %vm321 = vcmask 556032
        %322 = vst.msk [vmem:[#allocation2 + $0x18] sm:$0xff] %vm321, %v315
        %323 = vst [vmem:[#allocation2 + $0x30] sm:$0xff] %v316
        %324 = vst [vmem:[#allocation2 + $0x38] sm:$0xff] %v317
        %325 = vst.msk [vmem:[#allocation2 + $0x40] sm:$0xff] %vm321, %v318
        %v326 = vld [vmem:[%s250] sm:$0xff]
        %v327 = vld [vmem:[%s250 + $0x8] sm:$0xff]
        %v328 = vld [vmem:[%s250 + $0x10] sm:$0xff]
        %v329 = vld [vmem:[%s250 + $0x18] sm:$0xff]
        %v330 = vld [vmem:[#allocation2] sm:$0xff]
        %v331 = vld [vmem:[#allocation2 + $0x8] sm:$0xff]
        %v332 = vld [vmem:[#allocation2 + $0x10] sm:$0xff]
        %v333 = vld [vmem:[#allocation2 + $0x18] sm:$0xff]
        %v334 = vld [vmem:[#allocation2 + $0x28] sm:$0xff]
        %v335 = vld [vmem:[#allocation2 + $0x30] sm:$0xff]
        %v336 = vld [vmem:[#allocation2 + $0x38] sm:$0xff]
        %v337 = vld [vmem:[#allocation2 + $0x40] sm:$0xff]
        %346 = vrot.lane.b32.xlu0 %v330, 19
        %v347 = vpop.permute.xlu0 %346
        %348 = vrot.lane.b32.xlu0 %v331, 19
        %v349 = vpop.permute.xlu0 %348
        %350 = vrot.lane.b32.xlu0 %v332, 19
        %v351 = vpop.permute.xlu0 %350
        %352 = vrot.lane.b32.xlu0 %v333, 19
        %v353 = vpop.permute.xlu0 %352
        %354 = vrot.lane.b32.xlu0 %v334, 19
        %v355 = vpop.permute.xlu0 %354
        %356 = vrot.lane.b32.xlu0 %v335, 19
        %v357 = vpop.permute.xlu0 %356
        %358 = vrot.lane.b32.xlu0 %v336, 19
        %v359 = vpop.permute.xlu0 %358
        %360 = vrot.lane.b32.xlu0 %v337, 19
        %v361 = vpop.permute.xlu0 %360
        %vm362 = vcmask 154624
        %v363 = vsel %vm362, %v347, %v349
        %v364 = vsel %vm362, %v349, %v351
        %v365 = vsel %vm362, %v351, %v353
        %v366 = vsel %vm362, %v355, %v357
        %v367 = vsel %vm362, %v357, %v359
        %v368 = vsel %vm362, %v359, %v361
        %375 = vst [vmem:[#allocation4] sm:$0xff] %v363
        %376 = vst [vmem:[#allocation4 + $0x8] sm:$0xff] %v364
        %377 = vst.msk [vmem:[#allocation4 + $0x10] sm:$0xff] %vm321, %v365
        %378 = vst [vmem:[#allocation4 + $0x18] sm:$0xff] %v366
        %379 = vst [vmem:[#allocation4 + $0x20] sm:$0xff] %v367
        %380 = vst.msk [vmem:[#allocation4 + $0x28] sm:$0xff] %vm321, %v368
        %v381 = vld [vmem:[#allocation2] sm:$0xff]
        %v382 = vld [vmem:[#allocation2 + $0x8] sm:$0xff]
        %v383 = vld [vmem:[#allocation2 + $0x10] sm:$0xff]
        %v384 = vld [vmem:[#allocation2 + $0x18] sm:$0xff]
        %v385 = vld [vmem:[#allocation2 + $0x28] sm:$0xff]
        %v386 = vld [vmem:[#allocation2 + $0x30] sm:$0xff]
        %v387 = vld [vmem:[#allocation2 + $0x38] sm:$0xff]
        %v388 = vld [vmem:[#allocation2 + $0x40] sm:$0xff]
        %397 = vrot.lane.b32.xlu0 %v381, 18
        %v398 = vpop.permute.xlu0 %397
        %399 = vrot.lane.b32.xlu0 %v382, 18
        %v400 = vpop.permute.xlu0 %399
        %401 = vrot.lane.b32.xlu0 %v383, 18
        %v402 = vpop.permute.xlu0 %401
        %403 = vrot.lane.b32.xlu0 %v384, 18
        %v404 = vpop.permute.xlu0 %403
        %405 = vrot.lane.b32.xlu0 %v385, 18
        %v406 = vpop.permute.xlu0 %405
        %407 = vrot.lane.b32.xlu0 %v386, 18
        %v408 = vpop.permute.xlu0 %407
        %409 = vrot.lane.b32.xlu0 %v387, 18
        %v410 = vpop.permute.xlu0 %409
        %411 = vrot.lane.b32.xlu0 %v388, 18
        %v412 = vpop.permute.xlu0 %411
        %vm413 = vcmask 146432
        %v414 = vsel %vm413, %v398, %v400
        %v415 = vsel %vm413, %v400, %v402
        %v416 = vsel %vm413, %v402, %v404
        %v417 = vsel %vm413, %v406, %v408
        %v418 = vsel %vm413, %v408, %v410
        %v419 = vsel %vm413, %v410, %v412
        %426 = vst [vmem:[#allocation4 + $0x30] sm:$0xff] %v414
        %427 = vst [vmem:[#allocation4 + $0x38] sm:$0xff] %v415
        %428 = vst.msk [vmem:[#allocation4 + $0x40] sm:$0xff] %vm321, %v416
        %429 = vst [vmem:[#allocation4 + $0x48] sm:$0xff] %v417
        %430 = vst [vmem:[#allocation4 + $0x50] sm:$0xff] %v418
        %431 = vst.msk [vmem:[#allocation4 + $0x58] sm:$0xff] %vm321, %v419
        %v432 = vld [vmem:[#allocation2] sm:$0xff]
        %v433 = vld [vmem:[#allocation2 + $0x8] sm:$0xff]
        %v434 = vld [vmem:[#allocation2 + $0x10] sm:$0xff]
        %v435 = vld [vmem:[#allocation2 + $0x18] sm:$0xff]
        %v436 = vld [vmem:[#allocation2 + $0x28] sm:$0xff]
        %v437 = vld [vmem:[#allocation2 + $0x30] sm:$0xff]
        %v438 = vld [vmem:[#allocation2 + $0x38] sm:$0xff]
        %v439 = vld [vmem:[#allocation2 + $0x40] sm:$0xff]
        %448 = vrot.lane.b32.xlu0 %v432, 17
        %v449 = vpop.permute.xlu0 %448
        %450 = vrot.lane.b32.xlu0 %v433, 17
        %v451 = vpop.permute.xlu0 %450
        %452 = vrot.lane.b32.xlu0 %v434, 17
        %v453 = vpop.permute.xlu0 %452
        %454 = vrot.lane.b32.xlu0 %v435, 17
        %v455 = vpop.permute.xlu0 %454
        %456 = vrot.lane.b32.xlu0 %v436, 17
        %v457 = vpop.permute.xlu0 %456
        %458 = vrot.lane.b32.xlu0 %v437, 17
        %v459 = vpop.permute.xlu0 %458
        %460 = vrot.lane.b32.xlu0 %v438, 17
        %v461 = vpop.permute.xlu0 %460
        %462 = vrot.lane.b32.xlu0 %v439, 17
        %v463 = vpop.permute.xlu0 %462
        %vm464 = vcmask 138240
        %v465 = vsel %vm464, %v449, %v451
        %v466 = vsel %vm464, %v451, %v453
        %v467 = vsel %vm464, %v453, %v455
        %v468 = vsel %vm464, %v457, %v459
        %v469 = vsel %vm464, %v459, %v461
        %v470 = vsel %vm464, %v461, %v463
        %477 = vst [vmem:[#allocation4 + $0x60] sm:$0xff] %v465
        %478 = vst [vmem:[#allocation4 + $0x68] sm:$0xff] %v466
        %479 = vst.msk [vmem:[#allocation4 + $0x70] sm:$0xff] %vm321, %v467
        %480 = vst [vmem:[#allocation4 + $0x78] sm:$0xff] %v468
        %481 = vst [vmem:[#allocation4 + $0x80] sm:$0xff] %v469
        %482 = vst.msk [vmem:[#allocation4 + $0x88] sm:$0xff] %vm321, %v470
        %v483 = vld [vmem:[#allocation2] sm:$0xff]
        %v484 = vld [vmem:[#allocation2 + $0x8] sm:$0xff]
        %v485 = vld [vmem:[#allocation2 + $0x10] sm:$0xff]
        %v486 = vld [vmem:[#allocation2 + $0x18] sm:$0xff]
        %v487 = vld [vmem:[#allocation2 + $0x28] sm:$0xff]
        %v488 = vld [vmem:[#allocation2 + $0x30] sm:$0xff]
        %v489 = vld [vmem:[#allocation2 + $0x38] sm:$0xff]
        %v490 = vld [vmem:[#allocation2 + $0x40] sm:$0xff]
        %499 = vrot.lane.b32.xlu0 %v483, 1
        %v500 = vpop.permute.xlu0 %499
        %501 = vrot.lane.b32.xlu0 %v484, 1
        %v502 = vpop.permute.xlu0 %501
        %503 = vrot.lane.b32.xlu0 %v485, 1
        %v504 = vpop.permute.xlu0 %503
        %505 = vrot.lane.b32.xlu0 %v486, 1
        %v506 = vpop.permute.xlu0 %505
        %507 = vrot.lane.b32.xlu0 %v487, 1
        %v508 = vpop.permute.xlu0 %507
        %509 = vrot.lane.b32.xlu0 %v488, 1
        %v510 = vpop.permute.xlu0 %509
        %511 = vrot.lane.b32.xlu0 %v489, 1
        %v512 = vpop.permute.xlu0 %511
        %513 = vrot.lane.b32.xlu0 %v490, 1
        %v514 = vpop.permute.xlu0 %513
        %vm515 = vcmask 7168
        %v516 = vsel %vm515, %v500, %v502
        %v517 = vsel %vm515, %v502, %v504
        %v518 = vsel %vm515, %v504, %v506
        %v519 = vsel %vm515, %v508, %v510
        %v520 = vsel %vm515, %v510, %v512
        %v521 = vsel %vm515, %v512, %v514
        %528 = vst [vmem:[#allocation4 + $0x90] sm:$0xff] %v516
        %529 = vst [vmem:[#allocation4 + $0x98] sm:$0xff] %v517
        %530 = vst.msk [vmem:[#allocation4 + $0xa0] sm:$0xff] %vm321, %v518
        %531 = vst [vmem:[#allocation4 + $0xa8] sm:$0xff] %v519
        %532 = vst [vmem:[#allocation4 + $0xb0] sm:$0xff] %v520
        %533 = vst.msk [vmem:[#allocation4 + $0xb8] sm:$0xff] %vm321, %v521
        %v534 = vld [vmem:[#allocation2 + $0x8] sm:$0xff]
        %v535 = vld [vmem:[#allocation2 + $0x10] sm:$0xff]
        %v536 = vld [vmem:[#allocation2 + $0x18] sm:$0xff]
        %v537 = vld [vmem:[#allocation2 + $0x30] sm:$0xff]
        %v538 = vld [vmem:[#allocation2 + $0x38] sm:$0xff]
        %v539 = vld [vmem:[#allocation2 + $0x40] sm:$0xff]
        %540 = vst [vmem:[#allocation4 + $0xc0] sm:$0xff] %v534
        %541 = vst [vmem:[#allocation4 + $0xc8] sm:$0xff] %v535
        %542 = vst.msk [vmem:[#allocation4 + $0xd0] sm:$0xff] %vm321, %v536
        %543 = vst [vmem:[#allocation4 + $0xd8] sm:$0xff] %v537
        %544 = vst [vmem:[#allocation4 + $0xe0] sm:$0xff] %v538
        %545 = vst.msk [vmem:[#allocation4 + $0xe8] sm:$0xff] %vm321, %v539
        %v546 = vld [vmem:[#allocation2 + $0x8] sm:$0xff]
        %v547 = vld [vmem:[#allocation2 + $0x10] sm:$0xff]
        %v548 = vld [vmem:[#allocation2 + $0x18] sm:$0xff]
        %v549 = vld [vmem:[#allocation2 + $0x30] sm:$0xff]
        %v550 = vld [vmem:[#allocation2 + $0x38] sm:$0xff]
        %v551 = vld [vmem:[#allocation2 + $0x40] sm:$0xff]
        %558 = vrot.lane.b32.xlu0 %v546, 127
        %v559 = vpop.permute.xlu0 %558
        %560 = vrot.lane.b32.xlu0 %v547, 127
        %v561 = vpop.permute.xlu0 %560
        %562 = vrot.lane.b32.xlu0 %v548, 127
        %v563 = vpop.permute.xlu0 %562
        %564 = vrot.lane.b32.xlu0 %v549, 127
        %v565 = vpop.permute.xlu0 %564
        %566 = vrot.lane.b32.xlu0 %v550, 127
        %v567 = vpop.permute.xlu0 %566
        %568 = vrot.lane.b32.xlu0 %v551, 127
        %v569 = vpop.permute.xlu0 %568
        %vm570 = vcmask 1039360
        %v571 = vsel %vm570, %v559, %v561
        %v572 = vsel %vm570, %v561, %v563
        %v573 = vsel %vm570, %v565, %v567
        %v574 = vsel %vm570, %v567, %v569
        %581 = vst [vmem:[#allocation4 + $0xf0] sm:$0xff] %v571
        %582 = vst [vmem:[#allocation4 + $0xf8] sm:$0xff] %v572
        %583 = vst.msk [vmem:[#allocation4 + $0x100] sm:$0xff] %vm321, %v563
        %584 = vst [vmem:[#allocation4 + $0x108] sm:$0xff] %v573
        %585 = vst [vmem:[#allocation4 + $0x110] sm:$0xff] %v574
        %586 = vst.msk [vmem:[#allocation4 + $0x118] sm:$0xff] %vm321, %v569
        %v587 = vld [vmem:[#allocation2 + $0x8] sm:$0xff]
        %v588 = vld [vmem:[#allocation2 + $0x10] sm:$0xff]
        %v589 = vld [vmem:[#allocation2 + $0x18] sm:$0xff]
        %v590 = vld [vmem:[#allocation2 + $0x30] sm:$0xff]
        %v591 = vld [vmem:[#allocation2 + $0x38] sm:$0xff]
        %v592 = vld [vmem:[#allocation2 + $0x40] sm:$0xff]
        %599 = vrot.lane.b32.xlu0 %v587, 111
        %v600 = vpop.permute.xlu0 %599
        %601 = vrot.lane.b32.xlu0 %v588, 111
        %v602 = vpop.permute.xlu0 %601
        %603 = vrot.lane.b32.xlu0 %v589, 111
        %v604 = vpop.permute.xlu0 %603
        %605 = vrot.lane.b32.xlu0 %v590, 111
        %v606 = vpop.permute.xlu0 %605
        %607 = vrot.lane.b32.xlu0 %v591, 111
        %v608 = vpop.permute.xlu0 %607
        %609 = vrot.lane.b32.xlu0 %v592, 111
        %v610 = vpop.permute.xlu0 %609
        %vm611 = vcmask 908288
        %v612 = vsel %vm611, %v600, %v602
        %v613 = vsel %vm611, %v602, %v604
        %v614 = vsel %vm611, %v606, %v608
        %v615 = vsel %vm611, %v608, %v610
        %622 = vst [vmem:[#allocation4 + $0x120] sm:$0xff] %v612
        %623 = vst [vmem:[#allocation4 + $0x128] sm:$0xff] %v613
        %624 = vst.msk [vmem:[#allocation4 + $0x130] sm:$0xff] %vm321, %v604
        %625 = vst [vmem:[#allocation4 + $0x138] sm:$0xff] %v614
        %626 = vst [vmem:[#allocation4 + $0x140] sm:$0xff] %v615
        %627 = vst.msk [vmem:[#allocation4 + $0x148] sm:$0xff] %vm321, %v610
        %v628 = vld [vmem:[#allocation2 + $0x8] sm:$0xff]
        %v629 = vld [vmem:[#allocation2 + $0x10] sm:$0xff]
        %v630 = vld [vmem:[#allocation2 + $0x18] sm:$0xff]
        %v631 = vld [vmem:[#allocation2 + $0x30] sm:$0xff]
        %v632 = vld [vmem:[#allocation2 + $0x38] sm:$0xff]
        %v633 = vld [vmem:[#allocation2 + $0x40] sm:$0xff]
        %640 = vrot.lane.b32.xlu0 %v628, 110
        %v641 = vpop.permute.xlu0 %640
        %642 = vrot.lane.b32.xlu0 %v629, 110
        %v643 = vpop.permute.xlu0 %642
        %644 = vrot.lane.b32.xlu0 %v630, 110
        %v645 = vpop.permute.xlu0 %644
        %646 = vrot.lane.b32.xlu0 %v631, 110
        %v647 = vpop.permute.xlu0 %646
        %648 = vrot.lane.b32.xlu0 %v632, 110
        %v649 = vpop.permute.xlu0 %648
        %650 = vrot.lane.b32.xlu0 %v633, 110
        %v651 = vpop.permute.xlu0 %650
        %vm652 = vcmask 900096
        %v653 = vsel %vm652, %v641, %v643
        %v654 = vsel %vm652, %v643, %v645
        %v655 = vsel %vm652, %v647, %v649
        %v656 = vsel %vm652, %v649, %v651
        %663 = vst [vmem:[#allocation4 + $0x150] sm:$0xff] %v653
        %664 = vst [vmem:[#allocation4 + $0x158] sm:$0xff] %v654
        %665 = vst.msk [vmem:[#allocation4 + $0x160] sm:$0xff] %vm321, %v645
        %666 = vst [vmem:[#allocation4 + $0x168] sm:$0xff] %v655
        %667 = vst [vmem:[#allocation4 + $0x170] sm:$0xff] %v656
        %668 = vst.msk [vmem:[#allocation4 + $0x178] sm:$0xff] %vm321, %v651
        %v669 = vld [vmem:[#allocation2 + $0x8] sm:$0xff]
        %v670 = vld [vmem:[#allocation2 + $0x10] sm:$0xff]
        %v671 = vld [vmem:[#allocation2 + $0x18] sm:$0xff]
        %v672 = vld [vmem:[#allocation2 + $0x30] sm:$0xff]
        %v673 = vld [vmem:[#allocation2 + $0x38] sm:$0xff]
        %v674 = vld [vmem:[#allocation2 + $0x40] sm:$0xff]
        %681 = vrot.lane.b32.xlu0 %v669, 109
        %v682 = vpop.permute.xlu0 %681
        %683 = vrot.lane.b32.xlu0 %v670, 109
        %v684 = vpop.permute.xlu0 %683
        %685 = vrot.lane.b32.xlu0 %v671, 109
        %v686 = vpop.permute.xlu0 %685
        %687 = vrot.lane.b32.xlu0 %v672, 109
        %v688 = vpop.permute.xlu0 %687
        %689 = vrot.lane.b32.xlu0 %v673, 109
        %v690 = vpop.permute.xlu0 %689
        %691 = vrot.lane.b32.xlu0 %v674, 109
        %v692 = vpop.permute.xlu0 %691
        %vm693 = vcmask 891904
        %v694 = vsel %vm693, %v682, %v684
        %v695 = vsel %vm693, %v684, %v686
        %v696 = vsel %vm693, %v688, %v690
        %v697 = vsel %vm693, %v690, %v692
        %704 = vst [vmem:[#allocation4 + $0x180] sm:$0xff] %v694
        %705 = vst [vmem:[#allocation4 + $0x188] sm:$0xff] %v695
        %706 = vst.msk [vmem:[#allocation4 + $0x190] sm:$0xff] %vm321, %v686
        %707 = vst [vmem:[#allocation4 + $0x198] sm:$0xff] %v696
        %708 = vst [vmem:[#allocation4 + $0x1a0] sm:$0xff] %v697
        %709 = vst.msk [vmem:[#allocation4 + $0x1a8] sm:$0xff] %vm321, %v692
        %v710 = vld [vmem:[%s1] sm:$0xff]
        %v711 = vld [vmem:[%s1 + $0x8] sm:$0xf]
        %v712 = vld [vmem:[%s1 + $0xc] sm:$0xff]
        %v713 = vld [vmem:[%s1 + $0x14] sm:$0xf]
        %v714 = vld [vmem:[%s1 + $0x18] sm:$0xff]
        %v715 = vld [vmem:[%s1 + $0x20] sm:$0xf]
        %v716 = vld [vmem:[%s1 + $0x24] sm:$0xff]
        %v717 = vld [vmem:[%s1 + $0x2c] sm:$0xf]
        %v718 = vld [vmem:[#allocation4] sm:$0xff]
        %v719 = vld [vmem:[#allocation4 + $0x8] sm:$0xff]
        %v720 = vld [vmem:[#allocation4 + $0x10] sm:$0xff]
        %v721 = vld [vmem:[#allocation4 + $0x18] sm:$0xff]
        %v722 = vld [vmem:[#allocation4 + $0x20] sm:$0xff]
        %v723 = vld [vmem:[#allocation4 + $0x28] sm:$0xff]
        %v724 = vld [vmem:[#allocation4 + $0x30] sm:$0xff]
        %v725 = vld [vmem:[#allocation4 + $0x38] sm:$0xff]
        %v726 = vld [vmem:[#allocation4 + $0x40] sm:$0xff]
        %v727 = vld [vmem:[#allocation4 + $0x48] sm:$0xff]
        %v728 = vld [vmem:[#allocation4 + $0x50] sm:$0xff]
        %v729 = vld [vmem:[#allocation4 + $0x58] sm:$0xff]
        %v730 = vld [vmem:[#allocation4 + $0x60] sm:$0xff]
        %v731 = vld [vmem:[#allocation4 + $0x68] sm:$0xff]
        %v732 = vld [vmem:[#allocation4 + $0x70] sm:$0xff]
        %v733 = vld [vmem:[#allocation4 + $0x78] sm:$0xff]
        %v734 = vld [vmem:[#allocation4 + $0x80] sm:$0xff]
        %v735 = vld [vmem:[#allocation4 + $0x88] sm:$0xff]
        %v736 = vld [vmem:[#allocation4 + $0x90] sm:$0xff]
        %v737 = vld [vmem:[#allocation4 + $0x98] sm:$0xff]
        %v738 = vld [vmem:[#allocation4 + $0xa0] sm:$0xff]
        %v739 = vld [vmem:[#allocation4 + $0xa8] sm:$0xff]
        %v740 = vld [vmem:[#allocation4 + $0xb0] sm:$0xff]
        %v741 = vld [vmem:[#allocation4 + $0xb8] sm:$0xff]
        %v742 = vld [vmem:[#allocation4 + $0xc0] sm:$0xff]
        %v743 = vld [vmem:[#allocation4 + $0xc8] sm:$0xff]
        %v744 = vld [vmem:[#allocation4 + $0xd0] sm:$0xff]
        %v745 = vld [vmem:[#allocation4 + $0xd8] sm:$0xff]
        %v746 = vld [vmem:[#allocation4 + $0xe0] sm:$0xff]
        %v747 = vld [vmem:[#allocation4 + $0xe8] sm:$0xff]
        %v748 = vld [vmem:[#allocation4 + $0xf0] sm:$0xff]
        %v749 = vld [vmem:[#allocation4 + $0xf8] sm:$0xff]
        %v750 = vld [vmem:[#allocation4 + $0x100] sm:$0xff]
        %v751 = vld [vmem:[#allocation4 + $0x108] sm:$0xff]
        %v752 = vld [vmem:[#allocation4 + $0x110] sm:$0xff]
        %v753 = vld [vmem:[#allocation4 + $0x118] sm:$0xff]
        %v754 = vld [vmem:[#allocation4 + $0x120] sm:$0xff]
        %v755 = vld [vmem:[#allocation4 + $0x128] sm:$0xff]
        %v756 = vld [vmem:[#allocation4 + $0x130] sm:$0xff]
        %v757 = vld [vmem:[#allocation4 + $0x138] sm:$0xff]
        %v758 = vld [vmem:[#allocation4 + $0x140] sm:$0xff]
        %v759 = vld [vmem:[#allocation4 + $0x148] sm:$0xff]
        %v760 = vld [vmem:[#allocation4 + $0x150] sm:$0xff]
        %v761 = vld [vmem:[#allocation4 + $0x158] sm:$0xff]
        %v762 = vld [vmem:[#allocation4 + $0x160] sm:$0xff]
        %v763 = vld [vmem:[#allocation4 + $0x168] sm:$0xff]
        %v764 = vld [vmem:[#allocation4 + $0x170] sm:$0xff]
        %v765 = vld [vmem:[#allocation4 + $0x178] sm:$0xff]
        %v766 = vld [vmem:[#allocation4 + $0x180] sm:$0xff]
        %v767 = vld [vmem:[#allocation4 + $0x188] sm:$0xff]
        %v768 = vld [vmem:[#allocation4 + $0x190] sm:$0xff]
        %v769 = vld [vmem:[#allocation4 + $0x198] sm:$0xff]
        %v770 = vld [vmem:[#allocation4 + $0x1a0] sm:$0xff]
        %v771 = vld [vmem:[#allocation4 + $0x1a8] sm:$0xff]
        %v780 = vunpack.c.l.b16 %v710
        %v781 = vunpack.c.h.b16 %v710
        %v782 = vunpack.c.l.b16 %v711
        %v783 = vunpack.c.l.b16 %v712
        %v784 = vunpack.c.h.b16 %v712
        %v785 = vunpack.c.l.b16 %v713
        %v786 = vunpack.c.l.b16 %v714
        %v787 = vunpack.c.h.b16 %v714
        %v788 = vunpack.c.l.b16 %v715
        %v789 = vunpack.c.l.b16 %v716
        %v790 = vunpack.c.h.b16 %v716
        %v791 = vunpack.c.l.b16 %v717
        %v792 = vpack.c.b16 %v783, %v780
        %v793 = vpack.c.b16 %v784, %v781
        %v794 = vpack.c.b16 %v785, %v782
        %v795 = vpack.c.b16 %v789, %v786
        %v796 = vpack.c.b16 %v790, %v787
        %v797 = vpack.c.b16 %v791, %v788
        %vm802 = vcmask 261120
        %v804 = vsel %vm802, %v794, 0
        %v807 = vsel %vm802, %v797, 0
        %809 = vmatprep.subr.bf16.mxu0 %v719
        %810 = vmatpush1.bf16.msra.mxu0 %v718
        %811 = vmatprep.subr.bf16.mxu0 %v722
        %812 = vmatpush1.bf16.msra.mxu0 %v721
        %813 = vmatprep.subr.bf16.mxu0 %v725
        %814 = vmatpush1.bf16.msra.mxu0 %v724
        %815 = vmatprep.subr.bf16.mxu0 %v728
        %816 = vmatpush1.bf16.msra.mxu0 %v727
        %817 = vmatprep.subr.bf16.mxu0 %v731
        %818 = vmatpush1.bf16.msra.mxu0 %v730
        %819 = vmatprep.subr.bf16.mxu0 %v734
        %820 = vmatpush1.bf16.msra.mxu0 %v733
        %821 = vmatprep.subr.bf16.mxu0 %v737
        %822 = vmatpush1.bf16.msra.mxu0 %v736
        %823 = vmatprep.subr.bf16.mxu0 %v740
        %824 = vmatpush1.bf16.msra.mxu0 %v739
        %825 = vmatprep.subr.bf16.mxu0 %v743
        %826 = vmatpush1.bf16.msra.mxu0 %v742
        %827 = vmatprep.subr.bf16.mxu0 %v746
        %828 = vmatpush1.bf16.msra.mxu0 %v745
        %829 = vmatprep.subr.bf16.mxu0 %v749
        %830 = vmatpush1.bf16.msra.mxu0 %v748
        %831 = vmatprep.subr.bf16.mxu0 %v752
        %832 = vmatpush1.bf16.msra.mxu0 %v751
        %833 = vmatprep.subr.bf16.mxu0 %v755
        %834 = vmatpush1.bf16.msra.mxu0 %v754
        %835 = vmatprep.subr.bf16.mxu0 %v758
        %836 = vmatpush1.bf16.msra.mxu0 %v757
        %837 = vmatprep.subr.bf16.mxu0 %v761
        %838 = vmatpush1.bf16.msra.mxu0 %v760
        %839 = vmatprep.subr.bf16.mxu0 %v764
        %840 = vmatpush1.bf16.msra.mxu0 %v763
        %841 = vmatprep.mubr.bf16.mxu0 %v793
        %842 = vmatmul.mubr.bf16.gmra.mrb[0].mxu0 %v792
        %v843 = vpop.f32.mrb[0].mxu0
        %v844 = vadd.f32 0.0, %v843
        %v845 = vpop.f32.mrb[0].mxu0
        %v846 = vadd.f32 0.0, %v845
        %v847 = vpop.f32.mrb[0].mxu0
        %v848 = vadd.f32 0.0, %v847
        %v849 = vpop.f32.mrb[0].mxu0
        %v850 = vadd.f32 0.0, %v849
        %851 = vmatprep.mubr.bf16.mxu0 %v796
        %852 = vmatmul.mubr.bf16.gmra.mrb[0].mxu0 %v795
        %v853 = vpop.f32.mrb[0].mxu0
        %v854 = vadd.f32 0.0, %v853
        %v855 = vpop.f32.mrb[0].mxu0
        %v856 = vadd.f32 0.0, %v855
        %v857 = vpop.f32.mrb[0].mxu0
        %v858 = vadd.f32 0.0, %v857
        %v859 = vpop.f32.mrb[0].mxu0
        %v860 = vadd.f32 0.0, %v859
        %861 = vdwg.mxu0
        %862 = vmatprep.subr.bf16.mxu0 %v767
        %863 = vmatpush1.bf16.msra.mxu0 %v766
        %864 = vmatprep.subr.bf16.mxu0 %v770
        %865 = vmatpush1.bf16.msra.mxu0 %v769
        %866 = vmatprep.subr.bf16.mxu0 0
        %867 = vmatpush1.bf16.msra.mxu0 0
        %868 = vmatprep.subr.bf16.mxu0 0
        %869 = vmatpush1.bf16.msra.mxu0 0
        %870 = vmatprep.subr.bf16.mxu0 0
        %871 = vmatpush1.bf16.msra.mxu0 0
        %872 = vmatprep.subr.bf16.mxu0 0
        %873 = vmatpush1.bf16.msra.mxu0 0
        %874 = vmatprep.subr.bf16.mxu0 0
        %875 = vmatpush1.bf16.msra.mxu0 0
        %876 = vmatprep.subr.bf16.mxu0 0
        %877 = vmatpush1.bf16.msra.mxu0 0
        %878 = vmatprep.subr.bf16.mxu0 0
        %879 = vmatpush1.bf16.msra.mxu0 0
        %880 = vmatprep.subr.bf16.mxu0 0
        %881 = vmatpush1.bf16.msra.mxu0 0
        %882 = vmatprep.subr.bf16.mxu0 0
        %883 = vmatpush1.bf16.msra.mxu0 0
        %884 = vmatprep.subr.bf16.mxu0 0
        %885 = vmatpush1.bf16.msra.mxu0 0
        %886 = vmatprep.subr.bf16.mxu0 0
        %887 = vmatpush1.bf16.msra.mxu0 0
        %888 = vmatprep.subr.bf16.mxu0 0
        %889 = vmatpush1.bf16.msra.mxu0 0
        %890 = vmatprep.subr.bf16.mxu0 0
        %891 = vmatpush1.bf16.msra.mxu0 0
        %892 = vmatprep.subr.bf16.mxu0 0
        %893 = vmatpush1.bf16.msra.mxu0 0
        %894 = vmatprep.mubr.bf16.mxu0 0
        %895 = vmatmul.mubr.bf16.gmra.mrb[0].mxu0 %v804
        %v896 = vpop.f32.mrb[0].mxu0
        %v897 = vadd.f32 %v844, %v896
        %v898 = vpop.f32.mrb[0].mxu0
        %v899 = vadd.f32 %v846, %v898
        %v900 = vpop.f32.mrb[0].mxu0
        %v901 = vadd.f32 %v848, %v900
        %v902 = vpop.f32.mrb[0].mxu0
        %v903 = vadd.f32 %v850, %v902
        %904 = vmatprep.mubr.bf16.mxu0 0
        %905 = vmatmul.mubr.bf16.gmra.mrb[0].mxu0 %v807
        %v906 = vpop.f32.mrb[0].mxu0
        %v907 = vadd.f32 %v854, %v906
        %v908 = vpop.f32.mrb[0].mxu0
        %v909 = vadd.f32 %v856, %v908
        %v910 = vpop.f32.mrb[0].mxu0
        %v911 = vadd.f32 %v858, %v910
        %v912 = vpop.f32.mrb[0].mxu0
        %v913 = vadd.f32 %v860, %v912
        %914 = vdwg.mxu0
        %915 = vmatprep.subr.bf16.mxu0 0
        %916 = vmatpush1.bf16.msra.mxu0 %v720
        %917 = vmatprep.subr.bf16.mxu0 0
        %918 = vmatpush1.bf16.msra.mxu0 %v723
        %919 = vmatprep.subr.bf16.mxu0 0
        %920 = vmatpush1.bf16.msra.mxu0 %v726
        %921 = vmatprep.subr.bf16.mxu0 0
        %922 = vmatpush1.bf16.msra.mxu0 %v729
        %923 = vmatprep.subr.bf16.mxu0 0
        %924 = vmatpush1.bf16.msra.mxu0 %v732
        %925 = vmatprep.subr.bf16.mxu0 0
        %926 = vmatpush1.bf16.msra.mxu0 %v735
        %927 = vmatprep.subr.bf16.mxu0 0
        %928 = vmatpush1.bf16.msra.mxu0 %v738
        %929 = vmatprep.subr.bf16.mxu0 0
        %930 = vmatpush1.bf16.msra.mxu0 %v741
        %931 = vmatprep.subr.bf16.mxu0 0
        %932 = vmatpush1.bf16.msra.mxu0 %v744
        %933 = vmatprep.subr.bf16.mxu0 0
        %934 = vmatpush1.bf16.msra.mxu0 %v747
        %935 = vmatprep.subr.bf16.mxu0 0
        %936 = vmatpush1.bf16.msra.mxu0 %v750
        %937 = vmatprep.subr.bf16.mxu0 0
        %938 = vmatpush1.bf16.msra.mxu0 %v753
        %939 = vmatprep.subr.bf16.mxu0 0
        %940 = vmatpush1.bf16.msra.mxu0 %v756
        %941 = vmatprep.subr.bf16.mxu0 0
        %942 = vmatpush1.bf16.msra.mxu0 %v759
        %943 = vmatprep.subr.bf16.mxu0 0
        %944 = vmatpush1.bf16.msra.mxu0 %v762
        %945 = vmatprep.subr.bf16.mxu0 0
        %946 = vmatpush1.bf16.msra.mxu0 %v765
        %947 = vmatprep.mubr.bf16.mxu0 %v793
        %948 = vmatmul.mubr.bf16.gmra.mrb[0].mxu0 %v792
        %v949 = vpop.f32.mrb[0].mxu0
        %v950 = vadd.f32 0.0, %v949
        %v951 = vpop.f32.mrb[0].mxu0
        %v952 = vpop.f32.mrb[0].mxu0
        %v953 = vadd.f32 0.0, %v952
        %v954 = vpop.f32.mrb[0].mxu0
        %955 = vmatprep.mubr.bf16.mxu0 %v796
        %956 = vmatmul.mubr.bf16.gmra.mrb[0].mxu0 %v795
        %v957 = vpop.f32.mrb[0].mxu0
        %v958 = vadd.f32 0.0, %v957
        %v959 = vpop.f32.mrb[0].mxu0
        %v960 = vpop.f32.mrb[0].mxu0
        %v961 = vadd.f32 0.0, %v960
        %v962 = vpop.f32.mrb[0].mxu0
        %963 = vdwg.mxu0
        %964 = vmatprep.subr.bf16.mxu0 0
        %965 = vmatpush1.bf16.msra.mxu0 %v768
        %966 = vmatprep.subr.bf16.mxu0 0
        %967 = vmatpush1.bf16.msra.mxu0 %v771
        %968 = vmatprep.subr.bf16.mxu0 0
        %969 = vmatpush1.bf16.msra.mxu0 0
        %970 = vmatprep.subr.bf16.mxu0 0
        %971 = vmatpush1.bf16.msra.mxu0 0
        %972 = vmatprep.subr.bf16.mxu0 0
        %973 = vmatpush1.bf16.msra.mxu0 0
        %974 = vmatprep.subr.bf16.mxu0 0
        %975 = vmatpush1.bf16.msra.mxu0 0
        %976 = vmatprep.subr.bf16.mxu0 0
        %977 = vmatpush1.bf16.msra.mxu0 0
        %978 = vmatprep.subr.bf16.mxu0 0
        %979 = vmatpush1.bf16.msra.mxu0 0
        %980 = vmatprep.subr.bf16.mxu0 0
        %981 = vmatpush1.bf16.msra.mxu0 0
        %982 = vmatprep.subr.bf16.mxu0 0
        %983 = vmatpush1.bf16.msra.mxu0 0
        %984 = vmatprep.subr.bf16.mxu0 0
        %985 = vmatpush1.bf16.msra.mxu0 0
        %986 = vmatprep.subr.bf16.mxu0 0
        %987 = vmatpush1.bf16.msra.mxu0 0
        %988 = vmatprep.subr.bf16.mxu0 0
        %989 = vmatpush1.bf16.msra.mxu0 0
        %990 = vmatprep.subr.bf16.mxu0 0
        %991 = vmatpush1.bf16.msra.mxu0 0
        %992 = vmatprep.subr.bf16.mxu0 0
        %993 = vmatpush1.bf16.msra.mxu0 0
        %994 = vmatprep.subr.bf16.mxu0 0
        %995 = vmatpush1.bf16.msra.mxu0 0
        %996 = vmatprep.mubr.bf16.mxu0 0
        %997 = vmatmul.mubr.bf16.gmra.mrb[0].mxu0 %v804
        %v998 = vpop.f32.mrb[0].mxu0
        %v999 = vadd.f32 %v950, %v998
        %v1000 = vpop.f32.mrb[0].mxu0
        %v1001 = vpop.f32.mrb[0].mxu0
        %v1002 = vadd.f32 %v953, %v1001
        %v1003 = vpop.f32.mrb[0].mxu0
        %1004 = vmatprep.mubr.bf16.mxu0 0
        %1005 = vmatmul.mubr.bf16.gmra.mrb[0].mxu0 %v807
        %v1006 = vpop.f32.mrb[0].mxu0
        %v1007 = vadd.f32 %v958, %v1006
        %v1008 = vpop.f32.mrb[0].mxu0
        %v1009 = vpop.f32.mrb[0].mxu0
        %v1010 = vadd.f32 %v961, %v1009
        %v1011 = vpop.f32.mrb[0].mxu0
        %1012 = vdwg.mxu0
        %vm1013 = vcmp.eq.s32.totalorder %v295, 1
        %vm1014 = vcmp.eq.s32.totalorder %v296, 1
        %vm1015 = vcmp.eq.s32.totalorder %v297, 1
        %v1016 = vsel %vm1013, %v897, 0.0
        %v1017 = vsel %vm1014, %v899, 0.0
        %v1018 = vsel %vm1015, %v999, 0.0
        %v1019 = vsel %vm1013, %v901, 0.0
        %v1020 = vsel %vm1014, %v903, 0.0
        %v1021 = vsel %vm1015, %v1002, 0.0
        %v1022 = vsel %vm1013, %v907, 0.0
        %v1023 = vsel %vm1014, %v909, 0.0
        %v1024 = vsel %vm1015, %v1007, 0.0
        %v1025 = vsel %vm1013, %v911, 0.0
        %v1026 = vsel %vm1014, %v913, 0.0
        %v1027 = vsel %vm1015, %v1010, 0.0
        %v1028 = vadd.f32 %v1016, %v1017
        %v1029 = vsel %vm321, %v1018, 0.0
        %v1030 = vadd.f32 %v1028, %v1029
        %1031 = vadd.xlane.f32.xlu0 %v1030
        %v1032 = vpop.xlane.xlu0 %1031
        %v1033 = vadd.f32 %v1019, %v1020
        %v1034 = vsel %vm321, %v1021, 0.0
        %v1035 = vadd.f32 %v1033, %v1034
        %1036 = vadd.xlane.f32.xlu0 %v1035
        %v1037 = vpop.xlane.xlu0 %1036
        %v1038 = vadd.f32 %v1022, %v1023
        %v1039 = vsel %vm321, %v1024, 0.0
        %v1040 = vadd.f32 %v1038, %v1039
        %1041 = vadd.xlane.f32.xlu0 %v1040
        %v1042 = vpop.xlane.xlu0 %1041
        %v1043 = vadd.f32 %v1025, %v1026
        %v1044 = vsel %vm321, %v1027, 0.0
        %v1045 = vadd.f32 %v1043, %v1044
        %1046 = vadd.xlane.f32.xlu0 %v1045
        %v1047 = vpop.xlane.xlu0 %1046
        %v1048 = vmul.f32 %v1032, 0.00390625
        %v1049 = vmul.f32 %v1037, 0.00390625
        %v1050 = vmul.f32 %v1042, 0.00390625
        %v1051 = vmul.f32 %v1047, 0.00390625
        %v1052 = vsub.f32 %v1016, %v1048
        %v1053 = vsub.f32 %v1017, %v1048
        %v1054 = vsub.f32 %v1018, %v1048
        %v1055 = vsub.f32 %v1019, %v1049
        %v1056 = vsub.f32 %v1020, %v1049
        %v1057 = vsub.f32 %v1021, %v1049
        %v1058 = vsub.f32 %v1022, %v1050
        %v1059 = vsub.f32 %v1023, %v1050
        %v1060 = vsub.f32 %v1024, %v1050
        %v1061 = vsub.f32 %v1025, %v1051
        %v1062 = vsub.f32 %v1026, %v1051
        %v1063 = vsub.f32 %v1027, %v1051
        %v1064 = vmul.f32 %v1052, %v298
        %v1065 = vmul.f32 %v1053, %v299
        %v1066 = vmul.f32 %v1054, %v300
        %v1067 = vmul.f32 %v1055, %v298
        %v1068 = vmul.f32 %v1056, %v299
        %v1069 = vmul.f32 %v1057, %v300
        %v1070 = vmul.f32 %v1058, %v298
        %v1071 = vmul.f32 %v1059, %v299
        %v1072 = vmul.f32 %v1060, %v300
        %v1073 = vmul.f32 %v1061, %v298
        %v1074 = vmul.f32 %v1062, %v299
        %v1075 = vmul.f32 %v1063, %v300
        %v1076 = vmul.f32 %v1064, %v1064
        %v1077 = vmul.f32 %v1065, %v1065
        %v1078 = vmul.f32 %v1066, %v1066
        %v1079 = vmul.f32 %v1067, %v1067
        %v1080 = vmul.f32 %v1068, %v1068
        %v1081 = vmul.f32 %v1069, %v1069
        %v1082 = vmul.f32 %v1070, %v1070
        %v1083 = vmul.f32 %v1071, %v1071
        %v1084 = vmul.f32 %v1072, %v1072
        %v1085 = vmul.f32 %v1073, %v1073
        %v1086 = vmul.f32 %v1074, %v1074
        %v1087 = vmul.f32 %v1075, %v1075
        %v1088 = vadd.f32 %v1076, %v1077
        %v1089 = vsel %vm321, %v1078, 0.0
        %v1090 = vadd.f32 %v1088, %v1089
        %1091 = vadd.xlane.f32.xlu0 %v1090
        %v1092 = vpop.xlane.xlu0 %1091
        %v1093 = vadd.f32 %v1079, %v1080
        %v1094 = vsel %vm321, %v1081, 0.0
        %v1095 = vadd.f32 %v1093, %v1094
        %1096 = vadd.xlane.f32.xlu0 %v1095
        %v1097 = vpop.xlane.xlu0 %1096
        %v1098 = vadd.f32 %v1082, %v1083
        %v1099 = vsel %vm321, %v1084, 0.0
        %v1100 = vadd.f32 %v1098, %v1099
        %1101 = vadd.xlane.f32.xlu0 %v1100
        %v1102 = vpop.xlane.xlu0 %1101
        %v1103 = vadd.f32 %v1085, %v1086
        %v1104 = vsel %vm321, %v1087, 0.0
        %v1105 = vadd.f32 %v1103, %v1104
        %1106 = vadd.xlane.f32.xlu0 %v1105
        %v1107 = vpop.xlane.xlu0 %1106
        %v1108 = vmul.f32 %v1092, 0.00390625
        %v1109 = vmul.f32 %v1097, 0.00390625
        %v1110 = vmul.f32 %v1102, 0.00390625
        %v1111 = vmul.f32 %v1107, 0.00390625
        %v1112 = vadd.f32 %v1108, 1e-05
        %v1113 = vadd.f32 %v1109, 1e-05
        %v1114 = vadd.f32 %v1110, 1e-05
        %v1115 = vadd.f32 %v1111, 1e-05
        %v1116 = vrsqrt.pop %v1112
        %v1117 = vrsqrt.pop %v1113
        %v1118 = vrsqrt.pop %v1114
        %v1119 = vrsqrt.pop %v1115
        %v1120 = vmul.f32 %v1064, %v1116
        %v1121 = vmul.f32 %v1065, %v1116
        %v1122 = vmul.f32 %v1066, %v1116
        %v1123 = vmul.f32 %v1067, %v1117
        %v1124 = vmul.f32 %v1068, %v1117
        %v1125 = vmul.f32 %v1069, %v1117
        %v1126 = vmul.f32 %v1070, %v1118
        %v1127 = vmul.f32 %v1071, %v1118
        %v1128 = vmul.f32 %v1072, %v1118
        %v1129 = vmul.f32 %v1073, %v1119
        %v1130 = vmul.f32 %v1074, %v1119
        %v1131 = vmul.f32 %v1075, %v1119
        %1133 = vset.pattern.permute.xlu0 0
        %1134 = vperm.xlu0 %1133, %v326
        %v1135 = vpop.permute.xlu0 %1134
        %1138 = vset.pattern.permute.xlu0 0
        %1139 = vperm.xlu0 %1138, %v327
        %v1140 = vpop.permute.xlu0 %1139
        %1143 = vset.pattern.permute.xlu0 0
        %1144 = vperm.xlu0 %1143, %v328
        %v1145 = vpop.permute.xlu0 %1144
        %1148 = vset.pattern.permute.xlu0 0
        %1149 = vperm.xlu0 %1148, %v329
        %v1150 = vpop.permute.xlu0 %1149
        %v1152 = vmul.f32 %v1120, %v1135
        %v1153 = vmul.f32 %v1121, %v1135
        %v1154 = vmul.f32 %v1122, %v1135
        %v1155 = vmul.f32 %v1123, %v1140
        %v1156 = vmul.f32 %v1124, %v1140
        %v1157 = vmul.f32 %v1125, %v1140
        %v1158 = vmul.f32 %v1126, %v1145
        %v1159 = vmul.f32 %v1127, %v1145
        %v1160 = vmul.f32 %v1128, %v1145
        %v1161 = vmul.f32 %v1129, %v1150
        %v1162 = vmul.f32 %v1130, %v1150
        %v1163 = vmul.f32 %v1131, %v1150
        %1164 = vset.pattern.permute.xlu0 1
        %1165 = vperm.xlu0 %1164, %v326
        %v1166 = vpop.permute.xlu0 %1165
        %1168 = vset.pattern.permute.xlu0 1
        %1169 = vperm.xlu0 %1168, %v327
        %v1170 = vpop.permute.xlu0 %1169
        %1172 = vset.pattern.permute.xlu0 1
        %1173 = vperm.xlu0 %1172, %v328
        %v1174 = vpop.permute.xlu0 %1173
        %1176 = vset.pattern.permute.xlu0 1
        %1177 = vperm.xlu0 %1176, %v329
        %v1178 = vpop.permute.xlu0 %1177
        %v1180 = vadd.f32 %v1152, %v1166
        %v1181 = vadd.f32 %v1153, %v1166
        %v1182 = vadd.f32 %v1154, %v1166
        %v1183 = vadd.f32 %v1155, %v1170
        %v1184 = vadd.f32 %v1156, %v1170
        %v1185 = vadd.f32 %v1157, %v1170
        %v1186 = vadd.f32 %v1158, %v1174
        %v1187 = vadd.f32 %v1159, %v1174
        %v1188 = vadd.f32 %v1160, %v1174
        %v1189 = vadd.f32 %v1161, %v1178
        %v1190 = vadd.f32 %v1162, %v1178
        %v1191 = vadd.f32 %v1163, %v1178
        %v1192 = vmax.f32 %v1180, 0.0
        %v1193 = vmax.f32 %v1181, 0.0
        %v1194 = vmax.f32 %v1182, 0.0
        %v1195 = vmax.f32 %v1183, 0.0
        %v1196 = vmax.f32 %v1184, 0.0
        %v1197 = vmax.f32 %v1185, 0.0
        %v1198 = vmax.f32 %v1186, 0.0
        %v1199 = vmax.f32 %v1187, 0.0
        %v1200 = vmax.f32 %v1188, 0.0
        %v1201 = vmax.f32 %v1189, 0.0
        %v1202 = vmax.f32 %v1190, 0.0
        %v1203 = vmax.f32 %v1191, 0.0
        %v1204 = vmul.f32 %v1192, %v298
        %v1205 = vmul.f32 %v1193, %v299
        %v1206 = vmul.f32 %v1194, %v300
        %v1207 = vmul.f32 %v1195, %v298
        %v1208 = vmul.f32 %v1196, %v299
        %v1209 = vmul.f32 %v1197, %v300
        %v1210 = vmul.f32 %v1198, %v298
        %v1211 = vmul.f32 %v1199, %v299
        %v1212 = vmul.f32 %v1200, %v300
        %v1213 = vmul.f32 %v1201, %v298
        %v1214 = vmul.f32 %v1202, %v299
        %v1215 = vmul.f32 %v1203, %v300
        %v1216 = vpack.c.bf16 %v1207, %v1204
        %v1217 = vpack.c.bf16 %v1208, %v1205
        %v1218 = vpack.c.bf16 %v1209, %v1206
        %v1219 = vpack.c.bf16 %v1213, %v1210
        %v1220 = vpack.c.bf16 %v1214, %v1211
        %v1221 = vpack.c.bf16 %v1215, %v1212
        %1222 = vst [vmem:[#allocation3 + $0x8] sm:$0xff] %v1216
        %1223 = vst [vmem:[#allocation3 + $0x10] sm:$0xff] %v1217
        %1224 = vst.msk [vmem:[#allocation3 + $0x18] sm:$0xff] %vm321, %v1218
        %1225 = vst [vmem:[#allocation3 + $0x30] sm:$0xff] %v1219
        %1226 = vst [vmem:[#allocation3 + $0x38] sm:$0xff] %v1220
        %1227 = vst.msk [vmem:[#allocation3 + $0x40] sm:$0xff] %vm321, %v1221
        %v1228 = vld [vmem:[#allocation3] sm:$0xff]
        %v1229 = vld [vmem:[#allocation3 + $0x8] sm:$0xff]
        %v1230 = vld [vmem:[#allocation3 + $0x10] sm:$0xff]
        %v1231 = vld [vmem:[#allocation3 + $0x18] sm:$0xff]
        %v1232 = vld [vmem:[#allocation3 + $0x28] sm:$0xff]
        %v1233 = vld [vmem:[#allocation3 + $0x30] sm:$0xff]
        %v1234 = vld [vmem:[#allocation3 + $0x38] sm:$0xff]
        %v1235 = vld [vmem:[#allocation3 + $0x40] sm:$0xff]
        %1244 = vrot.lane.b32.xlu0 %v1228, 19
        %v1245 = vpop.permute.xlu0 %1244
        %1246 = vrot.lane.b32.xlu0 %v1229, 19
        %v1247 = vpop.permute.xlu0 %1246
        %1248 = vrot.lane.b32.xlu0 %v1230, 19
        %v1249 = vpop.permute.xlu0 %1248
        %1250 = vrot.lane.b32.xlu0 %v1231, 19
        %v1251 = vpop.permute.xlu0 %1250
        %1252 = vrot.lane.b32.xlu0 %v1232, 19
        %v1253 = vpop.permute.xlu0 %1252
        %1254 = vrot.lane.b32.xlu0 %v1233, 19
        %v1255 = vpop.permute.xlu0 %1254
        %1256 = vrot.lane.b32.xlu0 %v1234, 19
        %v1257 = vpop.permute.xlu0 %1256
        %1258 = vrot.lane.b32.xlu0 %v1235, 19
        %v1259 = vpop.permute.xlu0 %1258
        %v1260 = vsel %vm362, %v1245, %v1247
        %v1261 = vsel %vm362, %v1247, %v1249
        %v1262 = vsel %vm362, %v1249, %v1251
        %v1263 = vsel %vm362, %v1253, %v1255
        %v1264 = vsel %vm362, %v1255, %v1257
        %v1265 = vsel %vm362, %v1257, %v1259
        %1272 = vst [vmem:[#allocation4] sm:$0xff] %v1260
        %1273 = vst [vmem:[#allocation4 + $0x8] sm:$0xff] %v1261
        %1274 = vst.msk [vmem:[#allocation4 + $0x10] sm:$0xff] %vm321, %v1262
        %1275 = vst [vmem:[#allocation4 + $0x18] sm:$0xff] %v1263
        %1276 = vst [vmem:[#allocation4 + $0x20] sm:$0xff] %v1264
        %1277 = vst.msk [vmem:[#allocation4 + $0x28] sm:$0xff] %vm321, %v1265
        %v1278 = vld [vmem:[#allocation3] sm:$0xff]
        %v1279 = vld [vmem:[#allocation3 + $0x8] sm:$0xff]
        %v1280 = vld [vmem:[#allocation3 + $0x10] sm:$0xff]
        %v1281 = vld [vmem:[#allocation3 + $0x18] sm:$0xff]
        %v1282 = vld [vmem:[#allocation3 + $0x28] sm:$0xff]
        %v1283 = vld [vmem:[#allocation3 + $0x30] sm:$0xff]
        %v1284 = vld [vmem:[#allocation3 + $0x38] sm:$0xff]
        %v1285 = vld [vmem:[#allocation3 + $0x40] sm:$0xff]
        %1294 = vrot.lane.b32.xlu0 %v1278, 18
        %v1295 = vpop.permute.xlu0 %1294
        %1296 = vrot.lane.b32.xlu0 %v1279, 18
        %v1297 = vpop.permute.xlu0 %1296
        %1298 = vrot.lane.b32.xlu0 %v1280, 18
        %v1299 = vpop.permute.xlu0 %1298
        %1300 = vrot.lane.b32.xlu0 %v1281, 18
        %v1301 = vpop.permute.xlu0 %1300
        %1302 = vrot.lane.b32.xlu0 %v1282, 18
        %v1303 = vpop.permute.xlu0 %1302
        %1304 = vrot.lane.b32.xlu0 %v1283, 18
        %v1305 = vpop.permute.xlu0 %1304
        %1306 = vrot.lane.b32.xlu0 %v1284, 18
        %v1307 = vpop.permute.xlu0 %1306
        %1308 = vrot.lane.b32.xlu0 %v1285, 18
        %v1309 = vpop.permute.xlu0 %1308
        %v1310 = vsel %vm413, %v1295, %v1297
        %v1311 = vsel %vm413, %v1297, %v1299
        %v1312 = vsel %vm413, %v1299, %v1301
        %v1313 = vsel %vm413, %v1303, %v1305
        %v1314 = vsel %vm413, %v1305, %v1307
        %v1315 = vsel %vm413, %v1307, %v1309
        %1322 = vst [vmem:[#allocation4 + $0x30] sm:$0xff] %v1310
        %1323 = vst [vmem:[#allocation4 + $0x38] sm:$0xff] %v1311
        %1324 = vst.msk [vmem:[#allocation4 + $0x40] sm:$0xff] %vm321, %v1312
        %1325 = vst [vmem:[#allocation4 + $0x48] sm:$0xff] %v1313
        %1326 = vst [vmem:[#allocation4 + $0x50] sm:$0xff] %v1314
        %1327 = vst.msk [vmem:[#allocation4 + $0x58] sm:$0xff] %vm321, %v1315
        %v1328 = vld [vmem:[#allocation3] sm:$0xff]
        %v1329 = vld [vmem:[#allocation3 + $0x8] sm:$0xff]
        %v1330 = vld [vmem:[#allocation3 + $0x10] sm:$0xff]
        %v1331 = vld [vmem:[#allocation3 + $0x18] sm:$0xff]
        %v1332 = vld [vmem:[#allocation3 + $0x28] sm:$0xff]
        %v1333 = vld [vmem:[#allocation3 + $0x30] sm:$0xff]
        %v1334 = vld [vmem:[#allocation3 + $0x38] sm:$0xff]
        %v1335 = vld [vmem:[#allocation3 + $0x40] sm:$0xff]
        %1344 = vrot.lane.b32.xlu0 %v1328, 17
        %v1345 = vpop.permute.xlu0 %1344
        %1346 = vrot.lane.b32.xlu0 %v1329, 17
        %v1347 = vpop.permute.xlu0 %1346
        %1348 = vrot.lane.b32.xlu0 %v1330, 17
        %v1349 = vpop.permute.xlu0 %1348
        %1350 = vrot.lane.b32.xlu0 %v1331, 17
        %v1351 = vpop.permute.xlu0 %1350
        %1352 = vrot.lane.b32.xlu0 %v1332, 17
        %v1353 = vpop.permute.xlu0 %1352
        %1354 = vrot.lane.b32.xlu0 %v1333, 17
        %v1355 = vpop.permute.xlu0 %1354
        %1356 = vrot.lane.b32.xlu0 %v1334, 17
        %v1357 = vpop.permute.xlu0 %1356
        %1358 = vrot.lane.b32.xlu0 %v1335, 17
        %v1359 = vpop.permute.xlu0 %1358
        %v1360 = vsel %vm464, %v1345, %v1347
        %v1361 = vsel %vm464, %v1347, %v1349
        %v1362 = vsel %vm464, %v1349, %v1351
        %v1363 = vsel %vm464, %v1353, %v1355
        %v1364 = vsel %vm464, %v1355, %v1357
        %v1365 = vsel %vm464, %v1357, %v1359
        %1372 = vst [vmem:[#allocation4 + $0x60] sm:$0xff] %v1360
        %1373 = vst [vmem:[#allocation4 + $0x68] sm:$0xff] %v1361
        %1374 = vst.msk [vmem:[#allocation4 + $0x70] sm:$0xff] %vm321, %v1362
        %1375 = vst [vmem:[#allocation4 + $0x78] sm:$0xff] %v1363
        %1376 = vst [vmem:[#allocation4 + $0x80] sm:$0xff] %v1364
        %1377 = vst.msk [vmem:[#allocation4 + $0x88] sm:$0xff] %vm321, %v1365
        %v1378 = vld [vmem:[#allocation3] sm:$0xff]
        %v1379 = vld [vmem:[#allocation3 + $0x8] sm:$0xff]
        %v1380 = vld [vmem:[#allocation3 + $0x10] sm:$0xff]
        %v1381 = vld [vmem:[#allocation3 + $0x18] sm:$0xff]
        %v1382 = vld [vmem:[#allocation3 + $0x28] sm:$0xff]
        %v1383 = vld [vmem:[#allocation3 + $0x30] sm:$0xff]
        %v1384 = vld [vmem:[#allocation3 + $0x38] sm:$0xff]
        %v1385 = vld [vmem:[#allocation3 + $0x40] sm:$0xff]
        %1394 = vrot.lane.b32.xlu0 %v1378, 1
        %v1395 = vpop.permute.xlu0 %1394
        %1396 = vrot.lane.b32.xlu0 %v1379, 1
        %v1397 = vpop.permute.xlu0 %1396
        %1398 = vrot.lane.b32.xlu0 %v1380, 1
        %v1399 = vpop.permute.xlu0 %1398
        %1400 = vrot.lane.b32.xlu0 %v1381, 1
        %v1401 = vpop.permute.xlu0 %1400
        %1402 = vrot.lane.b32.xlu0 %v1382, 1
        %v1403 = vpop.permute.xlu0 %1402
        %1404 = vrot.lane.b32.xlu0 %v1383, 1
        %v1405 = vpop.permute.xlu0 %1404
        %1406 = vrot.lane.b32.xlu0 %v1384, 1
        %v1407 = vpop.permute.xlu0 %1406
        %1408 = vrot.lane.b32.xlu0 %v1385, 1
        %v1409 = vpop.permute.xlu0 %1408
        %v1410 = vsel %vm515, %v1395, %v1397
        %v1411 = vsel %vm515, %v1397, %v1399
        %v1412 = vsel %vm515, %v1399, %v1401
        %v1413 = vsel %vm515, %v1403, %v1405
        %v1414 = vsel %vm515, %v1405, %v1407
        %v1415 = vsel %vm515, %v1407, %v1409
        %1422 = vst [vmem:[#allocation4 + $0x90] sm:$0xff] %v1410
        %1423 = vst [vmem:[#allocation4 + $0x98] sm:$0xff] %v1411
        %1424 = vst.msk [vmem:[#allocation4 + $0xa0] sm:$0xff] %vm321, %v1412
        %1425 = vst [vmem:[#allocation4 + $0xa8] sm:$0xff] %v1413
        %1426 = vst [vmem:[#allocation4 + $0xb0] sm:$0xff] %v1414
        %1427 = vst.msk [vmem:[#allocation4 + $0xb8] sm:$0xff] %vm321, %v1415
        %v1428 = vld [vmem:[#allocation3 + $0x8] sm:$0xff]
        %v1429 = vld [vmem:[#allocation3 + $0x10] sm:$0xff]
        %v1430 = vld [vmem:[#allocation3 + $0x18] sm:$0xff]
        %v1431 = vld [vmem:[#allocation3 + $0x30] sm:$0xff]
        %v1432 = vld [vmem:[#allocation3 + $0x38] sm:$0xff]
        %v1433 = vld [vmem:[#allocation3 + $0x40] sm:$0xff]
        %1434 = vst [vmem:[#allocation4 + $0xc0] sm:$0xff] %v1428
        %1435 = vst [vmem:[#allocation4 + $0xc8] sm:$0xff] %v1429
        %1436 = vst.msk [vmem:[#allocation4 + $0xd0] sm:$0xff] %vm321, %v1430
        %1437 = vst [vmem:[#allocation4 + $0xd8] sm:$0xff] %v1431
        %1438 = vst [vmem:[#allocation4 + $0xe0] sm:$0xff] %v1432
        %1439 = vst.msk [vmem:[#allocation4 + $0xe8] sm:$0xff] %vm321, %v1433
        %v1440 = vld [vmem:[#allocation3 + $0x8] sm:$0xff]
        %v1441 = vld [vmem:[#allocation3 + $0x10] sm:$0xff]
        %v1442 = vld [vmem:[#allocation3 + $0x18] sm:$0xff]
        %v1443 = vld [vmem:[#allocation3 + $0x30] sm:$0xff]
        %v1444 = vld [vmem:[#allocation3 + $0x38] sm:$0xff]
        %v1445 = vld [vmem:[#allocation3 + $0x40] sm:$0xff]
        %1452 = vrot.lane.b32.xlu0 %v1440, 127
        %v1453 = vpop.permute.xlu0 %1452
        %1454 = vrot.lane.b32.xlu0 %v1441, 127
        %v1455 = vpop.permute.xlu0 %1454
        %1456 = vrot.lane.b32.xlu0 %v1442, 127
        %v1457 = vpop.permute.xlu0 %1456
        %1458 = vrot.lane.b32.xlu0 %v1443, 127
        %v1459 = vpop.permute.xlu0 %1458
        %1460 = vrot.lane.b32.xlu0 %v1444, 127
        %v1461 = vpop.permute.xlu0 %1460
        %1462 = vrot.lane.b32.xlu0 %v1445, 127
        %v1463 = vpop.permute.xlu0 %1462
        %v1464 = vsel %vm570, %v1453, %v1455
        %v1465 = vsel %vm570, %v1455, %v1457
        %v1466 = vsel %vm570, %v1459, %v1461
        %v1467 = vsel %vm570, %v1461, %v1463
        %1474 = vst [vmem:[#allocation4 + $0xf0] sm:$0xff] %v1464
        %1475 = vst [vmem:[#allocation4 + $0xf8] sm:$0xff] %v1465
        %1476 = vst.msk [vmem:[#allocation4 + $0x100] sm:$0xff] %vm321, %v1457
        %1477 = vst [vmem:[#allocation4 + $0x108] sm:$0xff] %v1466
        %1478 = vst [vmem:[#allocation4 + $0x110] sm:$0xff] %v1467
        %1479 = vst.msk [vmem:[#allocation4 + $0x118] sm:$0xff] %vm321, %v1463
        %v1480 = vld [vmem:[#allocation3 + $0x8] sm:$0xff]
        %v1481 = vld [vmem:[#allocation3 + $0x10] sm:$0xff]
        %v1482 = vld [vmem:[#allocation3 + $0x18] sm:$0xff]
        %v1483 = vld [vmem:[#allocation3 + $0x30] sm:$0xff]
        %v1484 = vld [vmem:[#allocation3 + $0x38] sm:$0xff]
        %v1485 = vld [vmem:[#allocation3 + $0x40] sm:$0xff]
        %1492 = vrot.lane.b32.xlu0 %v1480, 111
        %v1493 = vpop.permute.xlu0 %1492
        %1494 = vrot.lane.b32.xlu0 %v1481, 111
        %v1495 = vpop.permute.xlu0 %1494
        %1496 = vrot.lane.b32.xlu0 %v1482, 111
        %v1497 = vpop.permute.xlu0 %1496
        %1498 = vrot.lane.b32.xlu0 %v1483, 111
        %v1499 = vpop.permute.xlu0 %1498
        %1500 = vrot.lane.b32.xlu0 %v1484, 111
        %v1501 = vpop.permute.xlu0 %1500
        %1502 = vrot.lane.b32.xlu0 %v1485, 111
        %v1503 = vpop.permute.xlu0 %1502
        %v1504 = vsel %vm611, %v1493, %v1495
        %v1505 = vsel %vm611, %v1495, %v1497
        %v1506 = vsel %vm611, %v1499, %v1501
        %v1507 = vsel %vm611, %v1501, %v1503
        %1514 = vst [vmem:[#allocation4 + $0x120] sm:$0xff] %v1504
        %1515 = vst [vmem:[#allocation4 + $0x128] sm:$0xff] %v1505
        %1516 = vst.msk [vmem:[#allocation4 + $0x130] sm:$0xff] %vm321, %v1497
        %1517 = vst [vmem:[#allocation4 + $0x138] sm:$0xff] %v1506
        %1518 = vst [vmem:[#allocation4 + $0x140] sm:$0xff] %v1507
        %1519 = vst.msk [vmem:[#allocation4 + $0x148] sm:$0xff] %vm321, %v1503
        %v1520 = vld [vmem:[#allocation3 + $0x8] sm:$0xff]
        %v1521 = vld [vmem:[#allocation3 + $0x10] sm:$0xff]
        %v1522 = vld [vmem:[#allocation3 + $0x18] sm:$0xff]
        %v1523 = vld [vmem:[#allocation3 + $0x30] sm:$0xff]
        %v1524 = vld [vmem:[#allocation3 + $0x38] sm:$0xff]
        %v1525 = vld [vmem:[#allocation3 + $0x40] sm:$0xff]
        %1532 = vrot.lane.b32.xlu0 %v1520, 110
        %v1533 = vpop.permute.xlu0 %1532
        %1534 = vrot.lane.b32.xlu0 %v1521, 110
        %v1535 = vpop.permute.xlu0 %1534
        %1536 = vrot.lane.b32.xlu0 %v1522, 110
        %v1537 = vpop.permute.xlu0 %1536
        %1538 = vrot.lane.b32.xlu0 %v1523, 110
        %v1539 = vpop.permute.xlu0 %1538
        %1540 = vrot.lane.b32.xlu0 %v1524, 110
        %v1541 = vpop.permute.xlu0 %1540
        %1542 = vrot.lane.b32.xlu0 %v1525, 110
        %v1543 = vpop.permute.xlu0 %1542
        %v1544 = vsel %vm652, %v1533, %v1535
        %v1545 = vsel %vm652, %v1535, %v1537
        %v1546 = vsel %vm652, %v1539, %v1541
        %v1547 = vsel %vm652, %v1541, %v1543
        %1554 = vst [vmem:[#allocation4 + $0x150] sm:$0xff] %v1544
        %1555 = vst [vmem:[#allocation4 + $0x158] sm:$0xff] %v1545
        %1556 = vst.msk [vmem:[#allocation4 + $0x160] sm:$0xff] %vm321, %v1537
        %1557 = vst [vmem:[#allocation4 + $0x168] sm:$0xff] %v1546
        %1558 = vst [vmem:[#allocation4 + $0x170] sm:$0xff] %v1547
        %1559 = vst.msk [vmem:[#allocation4 + $0x178] sm:$0xff] %vm321, %v1543
        %v1560 = vld [vmem:[#allocation3 + $0x8] sm:$0xff]
        %v1561 = vld [vmem:[#allocation3 + $0x10] sm:$0xff]
        %v1562 = vld [vmem:[#allocation3 + $0x18] sm:$0xff]
        %v1563 = vld [vmem:[#allocation3 + $0x30] sm:$0xff]
        %v1564 = vld [vmem:[#allocation3 + $0x38] sm:$0xff]
        %v1565 = vld [vmem:[#allocation3 + $0x40] sm:$0xff]
        %1572 = vrot.lane.b32.xlu0 %v1560, 109
        %v1573 = vpop.permute.xlu0 %1572
        %1574 = vrot.lane.b32.xlu0 %v1561, 109
        %v1575 = vpop.permute.xlu0 %1574
        %1576 = vrot.lane.b32.xlu0 %v1562, 109
        %v1577 = vpop.permute.xlu0 %1576
        %1578 = vrot.lane.b32.xlu0 %v1563, 109
        %v1579 = vpop.permute.xlu0 %1578
        %1580 = vrot.lane.b32.xlu0 %v1564, 109
        %v1581 = vpop.permute.xlu0 %1580
        %1582 = vrot.lane.b32.xlu0 %v1565, 109
        %v1583 = vpop.permute.xlu0 %1582
        %v1584 = vsel %vm693, %v1573, %v1575
        %v1585 = vsel %vm693, %v1575, %v1577
        %v1586 = vsel %vm693, %v1579, %v1581
        %v1587 = vsel %vm693, %v1581, %v1583
        %1594 = vst [vmem:[#allocation4 + $0x180] sm:$0xff] %v1584
        %1595 = vst [vmem:[#allocation4 + $0x188] sm:$0xff] %v1585
        %1596 = vst.msk [vmem:[#allocation4 + $0x190] sm:$0xff] %vm321, %v1577
        %1597 = vst [vmem:[#allocation4 + $0x198] sm:$0xff] %v1586
        %1598 = vst [vmem:[#allocation4 + $0x1a0] sm:$0xff] %v1587
        %1599 = vst.msk [vmem:[#allocation4 + $0x1a8] sm:$0xff] %vm321, %v1583
        %v1600 = vld [vmem:[#allocation8] sm:$0xff]
        %v1601 = vld [vmem:[#allocation8 + $0x8] sm:$0xf]
        %v1602 = vld [vmem:[#allocation8 + $0xc] sm:$0xff]
        %v1603 = vld [vmem:[#allocation8 + $0x14] sm:$0xf]
        %v1604 = vld [vmem:[#allocation8 + $0x18] sm:$0xff]
        %v1605 = vld [vmem:[#allocation8 + $0x20] sm:$0xf]
        %v1606 = vld [vmem:[#allocation8 + $0x24] sm:$0xff]
        %v1607 = vld [vmem:[#allocation8 + $0x2c] sm:$0xf]
        %v1608 = vld [vmem:[#allocation4] sm:$0xff]
        %v1609 = vld [vmem:[#allocation4 + $0x8] sm:$0xff]
        %v1610 = vld [vmem:[#allocation4 + $0x10] sm:$0xff]
        %v1611 = vld [vmem:[#allocation4 + $0x18] sm:$0xff]
        %v1612 = vld [vmem:[#allocation4 + $0x20] sm:$0xff]
        %v1613 = vld [vmem:[#allocation4 + $0x28] sm:$0xff]
        %v1614 = vld [vmem:[#allocation4 + $0x30] sm:$0xff]
        %v1615 = vld [vmem:[#allocation4 + $0x38] sm:$0xff]
        %v1616 = vld [vmem:[#allocation4 + $0x40] sm:$0xff]
        %v1617 = vld [vmem:[#allocation4 + $0x48] sm:$0xff]
        %v1618 = vld [vmem:[#allocation4 + $0x50] sm:$0xff]
        %v1619 = vld [vmem:[#allocation4 + $0x58] sm:$0xff]
        %v1620 = vld [vmem:[#allocation4 + $0x60] sm:$0xff]
        %v1621 = vld [vmem:[#allocation4 + $0x68] sm:$0xff]
        %v1622 = vld [vmem:[#allocation4 + $0x70] sm:$0xff]
        %v1623 = vld [vmem:[#allocation4 + $0x78] sm:$0xff]
        %v1624 = vld [vmem:[#allocation4 + $0x80] sm:$0xff]
        %v1625 = vld [vmem:[#allocation4 + $0x88] sm:$0xff]
        %v1626 = vld [vmem:[#allocation4 + $0x90] sm:$0xff]
        %v1627 = vld [vmem:[#allocation4 + $0x98] sm:$0xff]
        %v1628 = vld [vmem:[#allocation4 + $0xa0] sm:$0xff]
        %v1629 = vld [vmem:[#allocation4 + $0xa8] sm:$0xff]
        %v1630 = vld [vmem:[#allocation4 + $0xb0] sm:$0xff]
        %v1631 = vld [vmem:[#allocation4 + $0xb8] sm:$0xff]
        %v1632 = vld [vmem:[#allocation4 + $0xc0] sm:$0xff]
        %v1633 = vld [vmem:[#allocation4 + $0xc8] sm:$0xff]
        %v1634 = vld [vmem:[#allocation4 + $0xd0] sm:$0xff]
        %v1635 = vld [vmem:[#allocation4 + $0xd8] sm:$0xff]
        %v1636 = vld [vmem:[#allocation4 + $0xe0] sm:$0xff]
        %v1637 = vld [vmem:[#allocation4 + $0xe8] sm:$0xff]
        %v1638 = vld [vmem:[#allocation4 + $0xf0] sm:$0xff]
        %v1639 = vld [vmem:[#allocation4 + $0xf8] sm:$0xff]
        %v1640 = vld [vmem:[#allocation4 + $0x100] sm:$0xff]
        %v1641 = vld [vmem:[#allocation4 + $0x108] sm:$0xff]
        %v1642 = vld [vmem:[#allocation4 + $0x110] sm:$0xff]
        %v1643 = vld [vmem:[#allocation4 + $0x118] sm:$0xff]
        %v1644 = vld [vmem:[#allocation4 + $0x120] sm:$0xff]
        %v1645 = vld [vmem:[#allocation4 + $0x128] sm:$0xff]
        %v1646 = vld [vmem:[#allocation4 + $0x130] sm:$0xff]
        %v1647 = vld [vmem:[#allocation4 + $0x138] sm:$0xff]
        %v1648 = vld [vmem:[#allocation4 + $0x140] sm:$0xff]
        %v1649 = vld [vmem:[#allocation4 + $0x148] sm:$0xff]
        %v1650 = vld [vmem:[#allocation4 + $0x150] sm:$0xff]
        %v1651 = vld [vmem:[#allocation4 + $0x158] sm:$0xff]
        %v1652 = vld [vmem:[#allocation4 + $0x160] sm:$0xff]
        %v1653 = vld [vmem:[#allocation4 + $0x168] sm:$0xff]
        %v1654 = vld [vmem:[#allocation4 + $0x170] sm:$0xff]
        %v1655 = vld [vmem:[#allocation4 + $0x178] sm:$0xff]
        %v1656 = vld [vmem:[#allocation4 + $0x180] sm:$0xff]
        %v1657 = vld [vmem:[#allocation4 + $0x188] sm:$0xff]
        %v1658 = vld [vmem:[#allocation4 + $0x190] sm:$0xff]
        %v1659 = vld [vmem:[#allocation4 + $0x198] sm:$0xff]
        %v1660 = vld [vmem:[#allocation4 + $0x1a0] sm:$0xff]
        %v1661 = vld [vmem:[#allocation4 + $0x1a8] sm:$0xff]
        %v1670 = vunpack.c.l.b16 %v1600
        %v1671 = vunpack.c.h.b16 %v1600
        %v1672 = vunpack.c.l.b16 %v1601
        %v1673 = vunpack.c.l.b16 %v1602
        %v1674 = vunpack.c.h.b16 %v1602
        %v1675 = vunpack.c.l.b16 %v1603
        %v1676 = vunpack.c.l.b16 %v1604
        %v1677 = vunpack.c.h.b16 %v1604
        %v1678 = vunpack.c.l.b16 %v1605
        %v1679 = vunpack.c.l.b16 %v1606
        %v1680 = vunpack.c.h.b16 %v1606
        %v1681 = vunpack.c.l.b16 %v1607
        %v1682 = vpack.c.b16 %v1673, %v1670
        %v1683 = vpack.c.b16 %v1674, %v1671
        %v1684 = vpack.c.b16 %v1675, %v1672
        %v1685 = vpack.c.b16 %v1679, %v1676
        %v1686 = vpack.c.b16 %v1680, %v1677
        %v1687 = vpack.c.b16 %v1681, %v1678
        %v1693 = vsel %vm802, %v1684, 0
        %v1696 = vsel %vm802, %v1687, 0
        %1698 = vmatprep.subr.bf16.mxu0 %v1609
        %1699 = vmatpush1.bf16.msra.mxu0 %v1608
        %1700 = vmatprep.subr.bf16.mxu0 %v1612
        %1701 = vmatpush1.bf16.msra.mxu0 %v1611
        %1702 = vmatprep.subr.bf16.mxu0 %v1615
        %1703 = vmatpush1.bf16.msra.mxu0 %v1614
        %1704 = vmatprep.subr.bf16.mxu0 %v1618
        %1705 = vmatpush1.bf16.msra.mxu0 %v1617
        %1706 = vmatprep.subr.bf16.mxu0 %v1621
        %1707 = vmatpush1.bf16.msra.mxu0 %v1620
        %1708 = vmatprep.subr.bf16.mxu0 %v1624
        %1709 = vmatpush1.bf16.msra.mxu0 %v1623
        %1710 = vmatprep.subr.bf16.mxu0 %v1627
        %1711 = vmatpush1.bf16.msra.mxu0 %v1626
        %1712 = vmatprep.subr.bf16.mxu0 %v1630
        %1713 = vmatpush1.bf16.msra.mxu0 %v1629
        %1714 = vmatprep.subr.bf16.mxu0 %v1633
        %1715 = vmatpush1.bf16.msra.mxu0 %v1632
        %1716 = vmatprep.subr.bf16.mxu0 %v1636
        %1717 = vmatpush1.bf16.msra.mxu0 %v1635
        %1718 = vmatprep.subr.bf16.mxu0 %v1639
        %1719 = vmatpush1.bf16.msra.mxu0 %v1638
        %1720 = vmatprep.subr.bf16.mxu0 %v1642
        %1721 = vmatpush1.bf16.msra.mxu0 %v1641
        %1722 = vmatprep.subr.bf16.mxu0 %v1645
        %1723 = vmatpush1.bf16.msra.mxu0 %v1644
        %1724 = vmatprep.subr.bf16.mxu0 %v1648
        %1725 = vmatpush1.bf16.msra.mxu0 %v1647
        %1726 = vmatprep.subr.bf16.mxu0 %v1651
        %1727 = vmatpush1.bf16.msra.mxu0 %v1650
        %1728 = vmatprep.subr.bf16.mxu0 %v1654
        %1729 = vmatpush1.bf16.msra.mxu0 %v1653
        %1730 = vmatprep.mubr.bf16.mxu0 %v1683
        %1731 = vmatmul.mubr.bf16.gmra.mrb[0].mxu0 %v1682
        %v1732 = vpop.f32.mrb[0].mxu0
        %v1733 = vadd.f32 0.0, %v1732
        %v1734 = vpop.f32.mrb[0].mxu0
        %v1735 = vadd.f32 0.0, %v1734
        %v1736 = vpop.f32.mrb[0].mxu0
        %v1737 = vadd.f32 0.0, %v1736
        %v1738 = vpop.f32.mrb[0].mxu0
        %v1739 = vadd.f32 0.0, %v1738
        %1740 = vmatprep.mubr.bf16.mxu0 %v1686
        %1741 = vmatmul.mubr.bf16.gmra.mrb[0].mxu0 %v1685
        %v1742 = vpop.f32.mrb[0].mxu0
        %v1743 = vadd.f32 0.0, %v1742
        %v1744 = vpop.f32.mrb[0].mxu0
        %v1745 = vadd.f32 0.0, %v1744
        %v1746 = vpop.f32.mrb[0].mxu0
        %v1747 = vadd.f32 0.0, %v1746
        %v1748 = vpop.f32.mrb[0].mxu0
        %v1749 = vadd.f32 0.0, %v1748
        %1750 = vdwg.mxu0
        %1751 = vmatprep.subr.bf16.mxu0 %v1657
        %1752 = vmatpush1.bf16.msra.mxu0 %v1656
        %1753 = vmatprep.subr.bf16.mxu0 %v1660
        %1754 = vmatpush1.bf16.msra.mxu0 %v1659
        %1755 = vmatprep.subr.bf16.mxu0 0
        %1756 = vmatpush1.bf16.msra.mxu0 0
        %1757 = vmatprep.subr.bf16.mxu0 0
        %1758 = vmatpush1.bf16.msra.mxu0 0
        %1759 = vmatprep.subr.bf16.mxu0 0
        %1760 = vmatpush1.bf16.msra.mxu0 0
        %1761 = vmatprep.subr.bf16.mxu0 0
        %1762 = vmatpush1.bf16.msra.mxu0 0
        %1763 = vmatprep.subr.bf16.mxu0 0
        %1764 = vmatpush1.bf16.msra.mxu0 0
        %1765 = vmatprep.subr.bf16.mxu0 0
        %1766 = vmatpush1.bf16.msra.mxu0 0
        %1767 = vmatprep.subr.bf16.mxu0 0
        %1768 = vmatpush1.bf16.msra.mxu0 0
        %1769 = vmatprep.subr.bf16.mxu0 0
        %1770 = vmatpush1.bf16.msra.mxu0 0
        %1771 = vmatprep.subr.bf16.mxu0 0
        %1772 = vmatpush1.bf16.msra.mxu0 0
        %1773 = vmatprep.subr.bf16.mxu0 0
        %1774 = vmatpush1.bf16.msra.mxu0 0
        %1775 = vmatprep.subr.bf16.mxu0 0
        %1776 = vmatpush1.bf16.msra.mxu0 0
        %1777 = vmatprep.subr.bf16.mxu0 0
        %1778 = vmatpush1.bf16.msra.mxu0 0
        %1779 = vmatprep.subr.bf16.mxu0 0
        %1780 = vmatpush1.bf16.msra.mxu0 0
        %1781 = vmatprep.subr.bf16.mxu0 0
        %1782 = vmatpush1.bf16.msra.mxu0 0
        %1783 = vmatprep.mubr.bf16.mxu0 0
        %1784 = vmatmul.mubr.bf16.gmra.mrb[0].mxu0 %v1693
        %v1785 = vpop.f32.mrb[0].mxu0
        %v1786 = vadd.f32 %v1733, %v1785
        %v1787 = vpop.f32.mrb[0].mxu0
        %v1788 = vadd.f32 %v1735, %v1787
        %v1789 = vpop.f32.mrb[0].mxu0
        %v1790 = vadd.f32 %v1737, %v1789
        %v1791 = vpop.f32.mrb[0].mxu0
        %v1792 = vadd.f32 %v1739, %v1791
        %1793 = vmatprep.mubr.bf16.mxu0 0
        %1794 = vmatmul.mubr.bf16.gmra.mrb[0].mxu0 %v1696
        %v1795 = vpop.f32.mrb[0].mxu0
        %v1796 = vadd.f32 %v1743, %v1795
        %v1797 = vpop.f32.mrb[0].mxu0
        %v1798 = vadd.f32 %v1745, %v1797
        %v1799 = vpop.f32.mrb[0].mxu0
        %v1800 = vadd.f32 %v1747, %v1799
        %v1801 = vpop.f32.mrb[0].mxu0
        %v1802 = vadd.f32 %v1749, %v1801
        %1803 = vdwg.mxu0
        %1804 = vmatprep.subr.bf16.mxu0 0
        %1805 = vmatpush1.bf16.msra.mxu0 %v1610
        %1806 = vmatprep.subr.bf16.mxu0 0
        %1807 = vmatpush1.bf16.msra.mxu0 %v1613
        %1808 = vmatprep.subr.bf16.mxu0 0
        %1809 = vmatpush1.bf16.msra.mxu0 %v1616
        %1810 = vmatprep.subr.bf16.mxu0 0
        %1811 = vmatpush1.bf16.msra.mxu0 %v1619
        %1812 = vmatprep.subr.bf16.mxu0 0
        %1813 = vmatpush1.bf16.msra.mxu0 %v1622
        %1814 = vmatprep.subr.bf16.mxu0 0
        %1815 = vmatpush1.bf16.msra.mxu0 %v1625
        %1816 = vmatprep.subr.bf16.mxu0 0
        %1817 = vmatpush1.bf16.msra.mxu0 %v1628
        %1818 = vmatprep.subr.bf16.mxu0 0
        %1819 = vmatpush1.bf16.msra.mxu0 %v1631
        %1820 = vmatprep.subr.bf16.mxu0 0
        %1821 = vmatpush1.bf16.msra.mxu0 %v1634
        %1822 = vmatprep.subr.bf16.mxu0 0
        %1823 = vmatpush1.bf16.msra.mxu0 %v1637
        %1824 = vmatprep.subr.bf16.mxu0 0
        %1825 = vmatpush1.bf16.msra.mxu0 %v1640
        %1826 = vmatprep.subr.bf16.mxu0 0
        %1827 = vmatpush1.bf16.msra.mxu0 %v1643
        %1828 = vmatprep.subr.bf16.mxu0 0
        %1829 = vmatpush1.bf16.msra.mxu0 %v1646
        %1830 = vmatprep.subr.bf16.mxu0 0
        %1831 = vmatpush1.bf16.msra.mxu0 %v1649
        %1832 = vmatprep.subr.bf16.mxu0 0
        %1833 = vmatpush1.bf16.msra.mxu0 %v1652
        %1834 = vmatprep.subr.bf16.mxu0 0
        %1835 = vmatpush1.bf16.msra.mxu0 %v1655
        %1836 = vmatprep.mubr.bf16.mxu0 %v1683
        %1837 = vmatmul.mubr.bf16.gmra.mrb[0].mxu0 %v1682
        %v1838 = vpop.f32.mrb[0].mxu0
        %v1839 = vadd.f32 0.0, %v1838
        %v1840 = vpop.f32.mrb[0].mxu0
        %v1841 = vpop.f32.mrb[0].mxu0
        %v1842 = vadd.f32 0.0, %v1841
        %v1843 = vpop.f32.mrb[0].mxu0
        %1844 = vmatprep.mubr.bf16.mxu0 %v1686
        %1845 = vmatmul.mubr.bf16.gmra.mrb[0].mxu0 %v1685
        %v1846 = vpop.f32.mrb[0].mxu0
        %v1847 = vadd.f32 0.0, %v1846
        %v1848 = vpop.f32.mrb[0].mxu0
        %v1849 = vpop.f32.mrb[0].mxu0
        %v1850 = vadd.f32 0.0, %v1849
        %v1851 = vpop.f32.mrb[0].mxu0
        %1852 = vdwg.mxu0
        %1853 = vmatprep.subr.bf16.mxu0 0
        %1854 = vmatpush1.bf16.msra.mxu0 %v1658
        %1855 = vmatprep.subr.bf16.mxu0 0
        %1856 = vmatpush1.bf16.msra.mxu0 %v1661
        %1857 = vmatprep.subr.bf16.mxu0 0
        %1858 = vmatpush1.bf16.msra.mxu0 0
        %1859 = vmatprep.subr.bf16.mxu0 0
        %1860 = vmatpush1.bf16.msra.mxu0 0
        %1861 = vmatprep.subr.bf16.mxu0 0
        %1862 = vmatpush1.bf16.msra.mxu0 0
        %1863 = vmatprep.subr.bf16.mxu0 0
        %1864 = vmatpush1.bf16.msra.mxu0 0
        %1865 = vmatprep.subr.bf16.mxu0 0
        %1866 = vmatpush1.bf16.msra.mxu0 0
        %1867 = vmatprep.subr.bf16.mxu0 0
        %1868 = vmatpush1.bf16.msra.mxu0 0
        %1869 = vmatprep.subr.bf16.mxu0 0
        %1870 = vmatpush1.bf16.msra.mxu0 0
        %1871 = vmatprep.subr.bf16.mxu0 0
        %1872 = vmatpush1.bf16.msra.mxu0 0
        %1873 = vmatprep.subr.bf16.mxu0 0
        %1874 = vmatpush1.bf16.msra.mxu0 0
        %1875 = vmatprep.subr.bf16.mxu0 0
        %1876 = vmatpush1.bf16.msra.mxu0 0
        %1877 = vmatprep.subr.bf16.mxu0 0
        %1878 = vmatpush1.bf16.msra.mxu0 0
        %1879 = vmatprep.subr.bf16.mxu0 0
        %1880 = vmatpush1.bf16.msra.mxu0 0
        %1881 = vmatprep.subr.bf16.mxu0 0
        %1882 = vmatpush1.bf16.msra.mxu0 0
        %1883 = vmatprep.subr.bf16.mxu0 0
        %1884 = vmatpush1.bf16.msra.mxu0 0
        %1885 = vmatprep.mubr.bf16.mxu0 0
        %1886 = vmatmul.mubr.bf16.gmra.mrb[0].mxu0 %v1693
        %v1887 = vpop.f32.mrb[0].mxu0
        %v1888 = vadd.f32 %v1839, %v1887
        %v1889 = vpop.f32.mrb[0].mxu0
        %v1890 = vpop.f32.mrb[0].mxu0
        %v1891 = vadd.f32 %v1842, %v1890
        %v1892 = vpop.f32.mrb[0].mxu0
        %1893 = vmatprep.mubr.bf16.mxu0 0
        %1894 = vmatmul.mubr.bf16.gmra.mrb[0].mxu0 %v1696
        %v1895 = vpop.f32.mrb[0].mxu0
        %v1896 = vadd.f32 %v1847, %v1895
        %v1897 = vpop.f32.mrb[0].mxu0
        %v1898 = vpop.f32.mrb[0].mxu0
        %v1899 = vadd.f32 %v1850, %v1898
        %v1900 = vpop.f32.mrb[0].mxu0
        %1901 = vdwg.mxu0
        %v1902 = vsel %vm1013, %v1786, 0.0
        %v1903 = vsel %vm1014, %v1788, 0.0
        %v1904 = vsel %vm1015, %v1888, 0.0
        %v1905 = vsel %vm1013, %v1790, 0.0
        %v1906 = vsel %vm1014, %v1792, 0.0
        %v1907 = vsel %vm1015, %v1891, 0.0
        %v1908 = vsel %vm1013, %v1796, 0.0
        %v1909 = vsel %vm1014, %v1798, 0.0
        %v1910 = vsel %vm1015, %v1896, 0.0
        %v1911 = vsel %vm1013, %v1800, 0.0
        %v1912 = vsel %vm1014, %v1802, 0.0
        %v1913 = vsel %vm1015, %v1899, 0.0
        %v1914 = vadd.f32 %v1902, %v1903
        %v1915 = vsel %vm321, %v1904, 0.0
        %v1916 = vadd.f32 %v1914, %v1915
        %1917 = vadd.xlane.f32.xlu0 %v1916
        %v1918 = vpop.xlane.xlu0 %1917
        %v1919 = vadd.f32 %v1905, %v1906
        %v1920 = vsel %vm321, %v1907, 0.0
        %v1921 = vadd.f32 %v1919, %v1920
        %1922 = vadd.xlane.f32.xlu0 %v1921
        %v1923 = vpop.xlane.xlu0 %1922
        %v1924 = vadd.f32 %v1908, %v1909
        %v1925 = vsel %vm321, %v1910, 0.0
        %v1926 = vadd.f32 %v1924, %v1925
        %1927 = vadd.xlane.f32.xlu0 %v1926
        %v1928 = vpop.xlane.xlu0 %1927
        %v1929 = vadd.f32 %v1911, %v1912
        %v1930 = vsel %vm321, %v1913, 0.0
        %v1931 = vadd.f32 %v1929, %v1930
        %1932 = vadd.xlane.f32.xlu0 %v1931
        %v1933 = vpop.xlane.xlu0 %1932
        %v1934 = vmul.f32 %v1918, 0.00390625
        %v1935 = vmul.f32 %v1923, 0.00390625
        %v1936 = vmul.f32 %v1928, 0.00390625
        %v1937 = vmul.f32 %v1933, 0.00390625
        %v1938 = vsub.f32 %v1902, %v1934
        %v1939 = vsub.f32 %v1903, %v1934
        %v1940 = vsub.f32 %v1904, %v1934
        %v1941 = vsub.f32 %v1905, %v1935
        %v1942 = vsub.f32 %v1906, %v1935
        %v1943 = vsub.f32 %v1907, %v1935
        %v1944 = vsub.f32 %v1908, %v1936
        %v1945 = vsub.f32 %v1909, %v1936
        %v1946 = vsub.f32 %v1910, %v1936
        %v1947 = vsub.f32 %v1911, %v1937
        %v1948 = vsub.f32 %v1912, %v1937
        %v1949 = vsub.f32 %v1913, %v1937
        %v1950 = vmul.f32 %v1938, %v298
        %v1951 = vmul.f32 %v1939, %v299
        %v1952 = vmul.f32 %v1940, %v300
        %v1953 = vmul.f32 %v1941, %v298
        %v1954 = vmul.f32 %v1942, %v299
        %v1955 = vmul.f32 %v1943, %v300
        %v1956 = vmul.f32 %v1944, %v298
        %v1957 = vmul.f32 %v1945, %v299
        %v1958 = vmul.f32 %v1946, %v300
        %v1959 = vmul.f32 %v1947, %v298
        %v1960 = vmul.f32 %v1948, %v299
        %v1961 = vmul.f32 %v1949, %v300
        %v1962 = vmul.f32 %v1950, %v1950
        %v1963 = vmul.f32 %v1951, %v1951
        %v1964 = vmul.f32 %v1952, %v1952
        %v1965 = vmul.f32 %v1953, %v1953
        %v1966 = vmul.f32 %v1954, %v1954
        %v1967 = vmul.f32 %v1955, %v1955
        %v1968 = vmul.f32 %v1956, %v1956
        %v1969 = vmul.f32 %v1957, %v1957
        %v1970 = vmul.f32 %v1958, %v1958
        %v1971 = vmul.f32 %v1959, %v1959
        %v1972 = vmul.f32 %v1960, %v1960
        %v1973 = vmul.f32 %v1961, %v1961
        %v1974 = vadd.f32 %v1962, %v1963
        %v1975 = vsel %vm321, %v1964, 0.0
        %v1976 = vadd.f32 %v1974, %v1975
        %1977 = vadd.xlane.f32.xlu0 %v1976
        %v1978 = vpop.xlane.xlu0 %1977
        %v1979 = vadd.f32 %v1965, %v1966
        %v1980 = vsel %vm321, %v1967, 0.0
        %v1981 = vadd.f32 %v1979, %v1980
        %1982 = vadd.xlane.f32.xlu0 %v1981
        %v1983 = vpop.xlane.xlu0 %1982
        %v1984 = vadd.f32 %v1968, %v1969
        %v1985 = vsel %vm321, %v1970, 0.0
        %v1986 = vadd.f32 %v1984, %v1985
        %1987 = vadd.xlane.f32.xlu0 %v1986
        %v1988 = vpop.xlane.xlu0 %1987
        %v1989 = vadd.f32 %v1971, %v1972
        %v1990 = vsel %vm321, %v1973, 0.0
        %v1991 = vadd.f32 %v1989, %v1990
        %1992 = vadd.xlane.f32.xlu0 %v1991
        %v1993 = vpop.xlane.xlu0 %1992
        %v1994 = vmul.f32 %v1978, 0.00390625
        %v1995 = vmul.f32 %v1983, 0.00390625
        %v1996 = vmul.f32 %v1988, 0.00390625
        %v1997 = vmul.f32 %v1993, 0.00390625
        %v1998 = vadd.f32 %v1994, 1e-05
        %v1999 = vadd.f32 %v1995, 1e-05
        %v2000 = vadd.f32 %v1996, 1e-05
        %v2001 = vadd.f32 %v1997, 1e-05
        %v2002 = vrsqrt.pop %v1998
        %v2003 = vrsqrt.pop %v1999
        %v2004 = vrsqrt.pop %v2000
        %v2005 = vrsqrt.pop %v2001
        %v2006 = vmul.f32 %v1950, %v2002
        %v2007 = vmul.f32 %v1951, %v2002
        %v2008 = vmul.f32 %v1952, %v2002
        %v2009 = vmul.f32 %v1953, %v2003
        %v2010 = vmul.f32 %v1954, %v2003
        %v2011 = vmul.f32 %v1955, %v2003
        %v2012 = vmul.f32 %v1956, %v2004
        %v2013 = vmul.f32 %v1957, %v2004
        %v2014 = vmul.f32 %v1958, %v2004
        %v2015 = vmul.f32 %v1959, %v2005
        %v2016 = vmul.f32 %v1960, %v2005
        %v2017 = vmul.f32 %v1961, %v2005
        %2018 = vset.pattern.permute.xlu0 2
        %2019 = vperm.xlu0 %2018, %v326
        %v2020 = vpop.permute.xlu0 %2019
        %2022 = vset.pattern.permute.xlu0 2
        %2023 = vperm.xlu0 %2022, %v327
        %v2024 = vpop.permute.xlu0 %2023
        %2026 = vset.pattern.permute.xlu0 2
        %2027 = vperm.xlu0 %2026, %v328
        %v2028 = vpop.permute.xlu0 %2027
        %2030 = vset.pattern.permute.xlu0 2
        %2031 = vperm.xlu0 %2030, %v329
        %v2032 = vpop.permute.xlu0 %2031
        %v2034 = vmul.f32 %v2006, %v2020
        %v2035 = vmul.f32 %v2007, %v2020
        %v2036 = vmul.f32 %v2008, %v2020
        %v2037 = vmul.f32 %v2009, %v2024
        %v2038 = vmul.f32 %v2010, %v2024
        %v2039 = vmul.f32 %v2011, %v2024
        %v2040 = vmul.f32 %v2012, %v2028
        %v2041 = vmul.f32 %v2013, %v2028
        %v2042 = vmul.f32 %v2014, %v2028
        %v2043 = vmul.f32 %v2015, %v2032
        %v2044 = vmul.f32 %v2016, %v2032
        %v2045 = vmul.f32 %v2017, %v2032
        %2046 = vset.pattern.permute.xlu0 3
        %2047 = vperm.xlu0 %2046, %v326
        %v2048 = vpop.permute.xlu0 %2047
        %2050 = vset.pattern.permute.xlu0 3
        %2051 = vperm.xlu0 %2050, %v327
        %v2052 = vpop.permute.xlu0 %2051
        %2054 = vset.pattern.permute.xlu0 3
        %2055 = vperm.xlu0 %2054, %v328
        %v2056 = vpop.permute.xlu0 %2055
        %2058 = vset.pattern.permute.xlu0 3
        %2059 = vperm.xlu0 %2058, %v329
        %v2060 = vpop.permute.xlu0 %2059
        %v2062 = vadd.f32 %v2034, %v2048
        %v2063 = vadd.f32 %v2035, %v2048
        %v2064 = vadd.f32 %v2036, %v2048
        %v2065 = vadd.f32 %v2037, %v2052
        %v2066 = vadd.f32 %v2038, %v2052
        %v2067 = vadd.f32 %v2039, %v2052
        %v2068 = vadd.f32 %v2040, %v2056
        %v2069 = vadd.f32 %v2041, %v2056
        %v2070 = vadd.f32 %v2042, %v2056
        %v2071 = vadd.f32 %v2043, %v2060
        %v2072 = vadd.f32 %v2044, %v2060
        %v2073 = vadd.f32 %v2045, %v2060
        %v2074 = vadd.f32 %v301, %v2062
        %v2075 = vadd.f32 %v302, %v2063
        %v2076 = vadd.f32 %v303, %v2064
        %v2077 = vadd.f32 %v304, %v2065
        %v2078 = vadd.f32 %v305, %v2066
        %v2079 = vadd.f32 %v306, %v2067
        %v2080 = vadd.f32 %v307, %v2068
        %v2081 = vadd.f32 %v308, %v2069
        %v2082 = vadd.f32 %v309, %v2070
        %v2083 = vadd.f32 %v310, %v2071
        %v2084 = vadd.f32 %v311, %v2072
        %v2085 = vadd.f32 %v312, %v2073
        %2086 = vst [vmem:[%s245] sm:$0xff] %v2074
        %2087 = vst [vmem:[%s245 + $0x8] sm:$0xff] %v2075
        %2088 = vst.msk [vmem:[%s245 + $0x10] sm:$0xff] %vm321, %v2076
        %2089 = vst [vmem:[%s245 + $0x18] sm:$0xff] %v2077
        %2090 = vst [vmem:[%s245 + $0x20] sm:$0xff] %v2078
        %2091 = vst.msk [vmem:[%s245 + $0x28] sm:$0xff] %vm321, %v2079
        %2092 = vst [vmem:[%s245 + $0x30] sm:$0xff] %v2080
        %2093 = vst [vmem:[%s245 + $0x38] sm:$0xff] %v2081
        %2094 = vst.msk [vmem:[%s245 + $0x40] sm:$0xff] %vm321, %v2082
        %2095 = vst [vmem:[%s245 + $0x48] sm:$0xff] %v2083
        %2096 = vst [vmem:[%s245 + $0x50] sm:$0xff] %v2084
        %2097 = vst.msk [vmem:[%s245 + $0x58] sm:$0xff] %vm321, %v2085
        %s2098 = sand.u32 %s124, 1
        %s2099 = scalar_lea.sflag [#allocation7], %s2098
        %s2100 = sand.u32 %s124, 1
        %s2101 = smul.addr %s2100, 96
        %s2102 = scalar_lea.vmem [#allocation10], %s2101
        // Predicated region
        $region45: #{tpu_custom_call.1} parent=35 // pred_check
          %p2103 = pneg %p134
        $region46: #{tpu_custom_call.1} parent=35 // pred_check_branch
          %2105 = sbr.rel (%p2103) target = $region48
        $region47: #{tpu_custom_call.1} parent=35 // pred_region
          %s2107 = ssub.s32 1536, 1536
          %2108 = vsyncadd %s2099, %s2107
          %s2109 = smul.addr %s22, 12
          %s2110 = smul.addr %s2109, 128
          %s2111 = scalar_lea.hbm %s4, %s2110
          %s2112 = sshll.u32 %s2102, 4
          %s2113 = int_to_ptr.vmem [resolvable:$true] %s2112
          %2118 = dma.vmem_to_hbm [thread:$0]  %s2113, 1536, %s2111, %s2099, 384, 384, 24
        $region48: #{tpu_custom_call.1} parent=35 // pred_fallthru
          _
      $region36: #{tpu_custom_call.1} parent=5 // pred_fallthru
        _
      %p2119 = scmp.le.s32.totalorder 2, %s17
      // Predicated region
      $region49: #{tpu_custom_call.1} parent=5 // pred_check
        %p2120 = pneg %p2119
      $region50: #{tpu_custom_call.1} parent=5 // pred_check_branch
        %2122 = sbr.rel (%p2120) target = $region52
      $region51: #{tpu_custom_call.1} parent=5 // pred_region
        %s2123 = ssub.s32 %s17, 2
        // Predicated region
        $region53: #{tpu_custom_call.1} parent=51 // pred_check
          %p2124 = pneg %p140
        $region54: #{tpu_custom_call.1} parent=51 // pred_check_branch
          %2126 = sbr.rel (%p2124) target = $region56
        $region55: #{tpu_custom_call.1} parent=51 // pred_region
          %s2127 = sand.u32 %s125, 1
          %s2128 = scalar_lea.sflag [#allocation7], %s2127
          %s2129 = sand.u32 %s125, 1
          %s2130 = smul.addr %s2129, 96
          %s2131 = scalar_lea.vmem [#allocation10], %s2130
          %2132 = dma.done %s2128, 1536
        $region56: #{tpu_custom_call.1} parent=51 // pred_fallthru
          _
      $region52: #{tpu_custom_call.1} parent=5 // pred_fallthru
        _
    $region6: #{tpu_custom_call.1} parent=1 // loop_footer
      %s21 = sadd.s32 1, %s17
    $region7: #{tpu_custom_call.1} parent=1 // loop_footer_branch
      %16 = sbr.rel target = $region3
    $region8: #{tpu_custom_call.1} parent=1 // loop_exit
      _
    %2133 = vsyncpa [#allocation6], 1
    %s2134 = scalar_lea.sflag [#allocation6], 1
    %2135 = vsyncpa %s2134, 1
    %2136 = vsyncpa [#allocation9], 1
    %2137 = vsyncpa [#allocation7], 1
    %s2138 = scalar_lea.sflag [#allocation7], 1
    %2139 = vsyncpa %s2138, 1

</llo_original>
